<compile_context>
chip_gen: v7x
topology: tpu7x:2x2x1
jax: 0.10.0
libtpu: 0.0.40
codegen_flags: <defaults>
</compile_context>

<pallas_src>
import numpy as np
import jax
import jax.numpy as jnp
from jax import lax
from jax.experimental import pallas as pl
from jax.experimental.pallas import tpu as pltpu


# ----------------------------------------------------------------------------
# Static geometry fixed by the PyTorch module (fc1 = Linear(32*3*9, 128) pins
# the input spatial size to 6 x 28).
# ----------------------------------------------------------------------------
_KH = 3
_H0, _W0 = 6, 28
_FC_OUT = 128
_CONV_DEFS = ((1, 8, 1, 1), (8, 16, 2, 2), (16, 32, 2, 2))  # (cin, cout, stride, pad)


def _round_up(x, m):
    return ((x + m - 1) // m) * m


def _build_geometry(h0=_H0, w0=_W0):
    convs = []
    h, w = h0, w0
    for cin, cout, stride, pad in _CONV_DEFS:
        h_out = (h + 2 * pad - _KH) // stride + 1
        w_out = (w + 2 * pad - _KH) // stride + 1
        convs.append(dict(cin=cin, cout=cout, stride=stride, pad=pad,
                          h_in=h, w_in=w, h_out=h_out, w_out=w_out,
                          k=_KH * w * cin, n=w_out * cout))
        h, w = h_out, w_out
    fc_k = convs[-1]["cout"] * h * w
    # Packed bf16 blob layout: 16-row-aligned weight sections, then biases
    # (one every 8 rows).  Lane width = widest N; a little lane padding is far
    # cheaper than 8 extra operand DMAs at these sizes.
    pack, row = {}, 0
    for li, L in enumerate(convs, start=1):
        pack["w%d" % li] = (row, L["k"], L["n"])
        row += _round_up(L["k"], 16)
    pack["wf"] = (row, fc_k, _FC_OUT)
    row += _round_up(fc_k, 16)
    bias_defs = (("b1", convs[0]["n"]), ("b2", convs[1]["n"]),
                 ("b3", convs[2]["n"]), ("bf", _FC_OUT))
    for bi, (name, n) in enumerate(bias_defs):
        pack[name] = (row + 8 * bi, n)
    rows = _round_up(row + 8 * len(bias_defs), 16)
    cols = max(_FC_OUT, max(L["n"] for L in convs))
    return dict(h0=h0, w0=w0, conv=convs, fc_k=fc_k, fc_out=_FC_OUT,
                pack=pack, rows=rows, cols=cols)


_GEOM = _build_geometry()


# ----------------------------------------------------------------------------
# Fused kernel: 3 convs + fc1, one MXU matmul each, all activations in VMEM.
# ----------------------------------------------------------------------------
def _im2col_h(a, *, batch, h_in, h_out, stride, pad):
    """H-axis im2col on channels-last activation rows.

    a: (batch*h_in, WC) rows ordered (b, h) b-major.
    returns (batch*h_out, KH*WC) rows ordered (b, oh); K ordered (tap, w, c),
    matching the host-side stacked weights.  Zero rows realize the H padding.
    """
    wc = a.shape[1]
    blocks = []
    for bi in range(batch):
        blk = a[bi * h_in:(bi + 1) * h_in, :]
        if pad:
            z = jnp.zeros((pad, wc), a.dtype)
            blk = jnp.concatenate([z, blk, z], axis=0)      # (h_in + 2*pad, WC)
        blocks.append(blk)
    taps = []
    for i in range(_KH):
        pieces = []
        for blk in blocks:
            if stride == 1:                                  # contiguous window
                pieces.append(blk[i:i + h_out, :])
            else:                                            # strided rows
                for oh in range(h_out):
                    r = i + stride * oh
                    pieces.append(blk[r:r + 1, :])
        taps.append(jnp.concatenate(pieces, axis=0))         # (batch*h_out, WC)
    return jnp.concatenate(taps, axis=-1)                    # (batch*h_out, KH*WC)


def _convnet_kernel(x_ref, wb_ref, o_ref):
    g = _GEOM
    batch = x_ref.shape[0] // g["h0"]
    a = x_ref[...]                                           # (B*H0, W0) f32
    for li, L in enumerate(g["conv"], start=1):
        woff, k, n = g["pack"]["w%d" % li]
        brow, bn = g["pack"]["b%d" % li]
        w = wb_ref[pl.ds(woff, k), pl.ds(0, n)]              # (K, N) bf16
        b = wb_ref[pl.ds(brow, 1), pl.ds(0, bn)]             # (1, N) bf16
        col = _im2col_h(a, batch=batch, h_in=L["h_in"], h_out=L["h_out"],
                        stride=L["stride"], pad=L["pad"])
        y = jnp.dot(col.astype(jnp.bfloat16), w,             # one MXU call/layer
                    preferred_element_type=jnp.float32)
        a = jnp.maximum(y + b, 0.0)                          # bias + ReLU in f32
    # fc1: per-batch lane-concat of conv3's h rows == torch's NCHW flatten
    # (the (c,h,w) -> (h,w,c) permutation is baked into the lowered fc weights).
    h3 = g["conv"][-1]["h_out"]
    feats = []
    for bi in range(batch):
        rows = [a[bi * h3 + h:bi * h3 + h + 1, :] for h in range(h3)]
        feats.append(jnp.concatenate(rows, axis=-1))
    feat = jnp.concatenate(feats, axis=0)                    # (B, fc_k)
    woff, k, n = g["pack"]["wf"]
    brow, bn = g["pack"]["bf"]
    wf = wb_ref[pl.ds(woff, k), pl.ds(0, n)]
    bf = wb_ref[pl.ds(brow, 1), pl.ds(0, bn)]
    out = jnp.dot(feat.astype(jnp.bfloat16), wf,
                  preferred_element_type=jnp.float32)
    o_ref[...] = (out + bf).astype(o_ref.dtype)              # (B, 128) lane-dense


@jax.jit
def convnet2d_forward(x, packed_wb):
    """x: (B, 6, 28) float32; packed_wb: bf16 blob from prepare_params()."""
    b, h, w = x.shape
    assert (h, w) == (_GEOM["h0"], _GEOM["w0"]), (h, w)
    x_rows = x.reshape(b * h, w)         # row-major collapse: no data movement
    vspec = pl.BlockSpec(memory_space=pltpu.MemorySpace.VMEM)
    return pl.pallas_call(
        _convnet_kernel,
        out_shape=jax.ShapeDtypeStruct((b, _GEOM["fc_out"]), jnp.float32),
        in_specs=[vspec, vspec],
        out_specs=vspec,
        compiler_params=pltpu.CompilerParams(
            vmem_limit_bytes=32 * 1024 * 1024),
    )(x_rows, packed_wb)


# ----------------------------------------------------------------------------
# One-time host-side weight lowering (PyTorch layouts -> kernel layouts).
# ----------------------------------------------------------------------------
def _lower_conv(w_oihw, b, w_in, stride, pad):
    """Lower a 3x3 conv along its W/channel axes and stack the KH taps along
    the contraction: returns (3*W_in*Cin, W_out*Cout) weights plus the W-tiled
    bias, so the kernel does ONE matmul per layer:
      out[(b,oh), :] = relu(bias + im2col[(b,oh), :] @ w_stacked)."""
    w = np.asarray(w_oihw, np.float32)
    cout, cin, kh, kw = w.shape
    w_out = (w_in + 2 * pad - kw) // stride + 1
    w_low = np.zeros((kh, w_in * cin, w_out * cout), np.float32)
    for i in range(kh):
        for j in range(kw):
            w_ij_t = w[:, :, i, j].T                         # (Cin, Cout)
            for ow in range(w_out):
                w_src = stride * ow + j - pad
                if 0 <= w_src < w_in:                        # W padding -> zeros
                    w_low[i, w_src * cin:(w_src + 1) * cin,
                          ow * cout:(ow + 1) * cout] = w_ij_t
    b_low = np.tile(np.asarray(b, np.float32), w_out)        # (W_out*Cout,)
    return w_low.reshape(kh * w_in * cin, w_out * cout), b_low


def _lower_fc(wf, bf, h3, w3, c3):
    """Permute fc1 so it consumes the channels-last (h, w, c) feature order
    produced by the lowered conv3 (matches torch's NCHW x.view(B, -1))."""
    wf = np.asarray(wf, np.float32)
    n = wf.shape[0]
    assert wf.shape[1] == c3 * h3 * w3, (wf.shape, c3, h3, w3)
    wf_hwcn = wf.reshape(n, c3, h3, w3).transpose(2, 3, 1, 0)   # (H3,W3,C3,N)
    return wf_hwcn.reshape(h3 * w3 * c3, n), np.asarray(bf, np.float32)


def prepare_params(params):
    """Done once: lower + stack + permute all weights, pack them (and the
    biases) into a single bf16 blob consumed directly by the fused kernel."""
    g = _GEOM
    packed = np.zeros((g["rows"], g["cols"]), np.float32)
    for li, L in enumerate(g["conv"], start=1):
        w_s, b_s = _lower_conv(params["w%d" % li], params["b%d" % li],
                               L["w_in"], L["stride"], L["pad"])
        assert w_s.shape == (L["k"], L["n"]), (w_s.shape, L)
        woff, k, n = g["pack"]["w%d" % li]
        packed[woff:woff + k, :n] = w_s
        brow, bn = g["pack"]["b%d" % li]
        packed[brow, :bn] = b_s
    last = g["conv"][-1]
    wf_s, bf_s = _lower_fc(params["wf"], params["bf"],
                           last["h_out"], last["w_out"], last["cout"])
    assert wf_s.shape == (g["fc_k"], g["fc_out"]), wf_s.shape
    woff, k, n = g["pack"]["wf"]
    packed[woff:woff + k, :n] = wf_s
    brow, bn = g["pack"]["bf"]
    packed[brow, :bn] = bf_s
    return jnp.asarray(packed, dtype=jnp.bfloat16)           # bf16 once, host-side


# ----------------------------------------------------------------------------
# Pure-JAX reference (original PyTorch-layout params) for the parity check.
# ----------------------------------------------------------------------------
@jax.jit
def reference_forward(x, params):
    x = x[:, None, :, :]

    def conv(x, w, b, stride, pad):
        y = lax.conv_general_dilated(
            x, w, window_strides=(stride, stride),
            padding=[(pad, pad), (pad, pad)],
            dimension_numbers=("NCHW", "OIHW", "NCHW"),
            precision=lax.Precision.HIGHEST)
        return y + b[None, :, None, None]

    x = jax.nn.relu(conv(x, params["w1"], params["b1"], 1, 1))
    x = jax.nn.relu(conv(x, params["w2"], params["b2"], 2, 2))
    x = jax.nn.relu(conv(x, params["w3"], params["b3"], 2, 2))
    feat = x.reshape(x.shape[0], -1)
    return feat @ params["wf"].T + params["bf"]


# ----------------------------------------------------------------------------
# Deterministic parameter init (PyTorch-style uniform(-1/sqrt(fan_in), +)).
# ----------------------------------------------------------------------------
def init_params(key):
    def uinit(k, shape, fan_in):
        bound = 1.0 / jnp.sqrt(fan_in)
        return jax.random.uniform(k, shape, jnp.float32, -bound, bound)

    ks = jax.random.split(key, 8)
    return {
        "w1": uinit(ks[0], (8, 1, 3, 3), 1 * 9),
        "b1": uinit(ks[1], (8,), 1 * 9),
        "w2": uinit(ks[2], (16, 8, 3, 3), 8 * 9),
        "b2": uinit(ks[3], (16,), 8 * 9),
        "w3": uinit(ks[4], (32, 16, 3, 3), 16 * 9),
        "b3": uinit(ks[5], (32,), 16 * 9),
        "wf": uinit(ks[6], (128, 32 * 3 * 9), 32 * 3 * 9),
        "bf": uinit(ks[7], (128,), 32 * 3 * 9),
    }


if __name__ == "__main__":
    key = jax.random.PRNGKey(0)
    kx, kp = jax.random.split(key)

    # (B, H, W) = (2, 6, 28): after the three convs the spatial size is 3 x 9,
    # so the flattened features are 32*3*9 = 864, matching fc1's input size.
    x = jax.random.normal(kx, (2, _H0, _W0), dtype=jnp.float32)
    params = init_params(kp)
    packed_wb = prepare_params(params)       # one-time host-side lowering

    out = jax.block_until_ready(convnet2d_forward(x, packed_wb))
    assert out.shape == (2, _FC_OUT), out.shape

    ref = jax.block_until_ready(reference_forward(x, params))
    err = float(jnp.max(jnp.abs(out - ref)))
    # bf16 weights/activations feeding the MXU (f32 accumulation) vs. an f32
    # HIGHEST-precision reference: a few 1e-3 of quantization error expected.
    assert jnp.allclose(out, ref, rtol=2e-2, atol=2e-2), err

    print("KERNEL_OK")
</pallas_src>

<mosaic_0001>
module attributes {stable_mosaic.version = 11 : i64} {
  func.func @_convnet_kernel(%arg0: memref<12x28xf32, #tpu.memory_space<vmem>>, %arg1: memref<2384x288xbf16, #tpu.memory_space<vmem>>, %arg2: memref<2x128xf32, #tpu.memory_space<vmem>>) attributes {dimension_semantics = [], scalar_prefetch = 0 : i64, scratch_operands = 0 : i64, tpu.core_type = #tpu.core_type<tc>} {
    %c0 = arith.constant 0 : index
    %c0_0 = arith.constant 0 : index
    %0 = vector.load %arg0[%c0, %c0_0] : memref<12x28xf32, #tpu.memory_space<vmem>>, vector<12x28xf32>
    %c0_1 = arith.constant 0 : index
    %c0_2 = arith.constant 0 : index
    %1 = vector.load %arg1[%c0_1, %c0_2] : memref<2384x288xbf16, #tpu.memory_space<vmem>>, vector<84x224xbf16>
    %c2352 = arith.constant 2352 : index
    %c0_3 = arith.constant 0 : index
    %2 = vector.load %arg1[%c2352, %c0_3] : memref<2384x288xbf16, #tpu.memory_space<vmem>>, vector<1x224xbf16>
    %3 = vector.extract_strided_slice %0 {offsets = [0, 0], sizes = [6, 28], strides = [1, 1]} : vector<12x28xf32> to vector<6x28xf32>
    %cst = arith.constant 0.000000e+00 : f32
    %4 = vector.broadcast %cst : f32 to vector<1x28xf32>
    %5 = tpu.concatenate %4, %3, %4 in 0 : vector<1x28xf32>, vector<6x28xf32>, vector<1x28xf32> -> vector<8x28xf32>
    %6 = vector.extract_strided_slice %0 {offsets = [6, 0], sizes = [6, 28], strides = [1, 1]} : vector<12x28xf32> to vector<6x28xf32>
    %cst_4 = arith.constant 0.000000e+00 : f32
    %7 = vector.broadcast %cst_4 : f32 to vector<1x28xf32>
    %8 = tpu.concatenate %7, %6, %7 in 0 : vector<1x28xf32>, vector<6x28xf32>, vector<1x28xf32> -> vector<8x28xf32>
    %9 = vector.extract_strided_slice %5 {offsets = [0, 0], sizes = [6, 28], strides = [1, 1]} : vector<8x28xf32> to vector<6x28xf32>
    %10 = vector.extract_strided_slice %8 {offsets = [0, 0], sizes = [6, 28], strides = [1, 1]} : vector<8x28xf32> to vector<6x28xf32>
    %11 = tpu.concatenate %9, %10 in 0 : vector<6x28xf32>, vector<6x28xf32> -> vector<12x28xf32>
    %12 = vector.extract_strided_slice %5 {offsets = [1, 0], sizes = [6, 28], strides = [1, 1]} : vector<8x28xf32> to vector<6x28xf32>
    %13 = vector.extract_strided_slice %8 {offsets = [1, 0], sizes = [6, 28], strides = [1, 1]} : vector<8x28xf32> to vector<6x28xf32>
    %14 = tpu.concatenate %12, %13 in 0 : vector<6x28xf32>, vector<6x28xf32> -> vector<12x28xf32>
    %15 = vector.extract_strided_slice %5 {offsets = [2, 0], sizes = [6, 28], strides = [1, 1]} : vector<8x28xf32> to vector<6x28xf32>
    %16 = vector.extract_strided_slice %8 {offsets = [2, 0], sizes = [6, 28], strides = [1, 1]} : vector<8x28xf32> to vector<6x28xf32>
    %17 = tpu.concatenate %15, %16 in 0 : vector<6x28xf32>, vector<6x28xf32> -> vector<12x28xf32>
    %18 = tpu.concatenate %11, %14, %17 in 1 : vector<12x28xf32>, vector<12x28xf32>, vector<12x28xf32> -> vector<12x84xf32>
    %19 = arith.truncf %18 : vector<12x84xf32> to vector<12x84xbf16>
    %cst_5 = arith.constant dense<0.000000e+00> : vector<12x224xf32>
    %20 = tpu.matmul %19, %1, %cst_5 {dimension_numbers = #tpu.dot_dimension_numbers<[1], [0], [0], [1], [0, 0, 1, 1], [], []>} : vector<12x84xbf16>, vector<84x224xbf16>, vector<12x224xf32> -> vector<12x224xf32>
    %21 = arith.extf %2 : vector<1x224xbf16> to vector<1x224xf32>
    %22 = vector.broadcast %21 : vector<1x224xf32> to vector<12x224xf32>
    %23 = arith.addf %20, %22 : vector<12x224xf32>
    %cst_6 = arith.constant 0.000000e+00 : f32
    %24 = vector.broadcast %cst_6 : f32 to vector<12x224xf32>
    %25 = arith.maximumf %23, %24 : vector<12x224xf32>
    %c96 = arith.constant 96 : index
    %c0_7 = arith.constant 0 : index
    %26 = vector.load %arg1[%c96, %c0_7] : memref<2384x288xbf16, #tpu.memory_space<vmem>>, vector<672x240xbf16>
    %c2360 = arith.constant 2360 : index
    %c0_8 = arith.constant 0 : index
    %27 = vector.load %arg1[%c2360, %c0_8] : memref<2384x288xbf16, #tpu.memory_space<vmem>>, vector<1x240xbf16>
    %28 = vector.extract_strided_slice %25 {offsets = [0, 0], sizes = [6, 224], strides = [1, 1]} : vector<12x224xf32> to vector<6x224xf32>
    %cst_9 = arith.constant 0.000000e+00 : f32
    %29 = vector.broadcast %cst_9 : f32 to vector<2x224xf32>
    %30 = tpu.concatenate %29, %28, %29 in 0 : vector<2x224xf32>, vector<6x224xf32>, vector<2x224xf32> -> vector<10x224xf32>
    %31 = vector.extract_strided_slice %25 {offsets = [6, 0], sizes = [6, 224], strides = [1, 1]} : vector<12x224xf32> to vector<6x224xf32>
    %cst_10 = arith.constant 0.000000e+00 : f32
    %32 = vector.broadcast %cst_10 : f32 to vector<2x224xf32>
    %33 = tpu.concatenate %32, %31, %32 in 0 : vector<2x224xf32>, vector<6x224xf32>, vector<2x224xf32> -> vector<10x224xf32>
    %34 = vector.extract_strided_slice %30 {offsets = [0, 0], sizes = [1, 224], strides = [1, 1]} : vector<10x224xf32> to vector<1x224xf32>
    %35 = vector.extract_strided_slice %30 {offsets = [2, 0], sizes = [1, 224], strides = [1, 1]} : vector<10x224xf32> to vector<1x224xf32>
    %36 = vector.extract_strided_slice %30 {offsets = [4, 0], sizes = [1, 224], strides = [1, 1]} : vector<10x224xf32> to vector<1x224xf32>
    %37 = vector.extract_strided_slice %30 {offsets = [6, 0], sizes = [1, 224], strides = [1, 1]} : vector<10x224xf32> to vector<1x224xf32>
    %38 = vector.extract_strided_slice %33 {offsets = [0, 0], sizes = [1, 224], strides = [1, 1]} : vector<10x224xf32> to vector<1x224xf32>
    %39 = vector.extract_strided_slice %33 {offsets = [2, 0], sizes = [1, 224], strides = [1, 1]} : vector<10x224xf32> to vector<1x224xf32>
    %40 = vector.extract_strided_slice %33 {offsets = [4, 0], sizes = [1, 224], strides = [1, 1]} : vector<10x224xf32> to vector<1x224xf32>
    %41 = vector.extract_strided_slice %33 {offsets = [6, 0], sizes = [1, 224], strides = [1, 1]} : vector<10x224xf32> to vector<1x224xf32>
    %42 = tpu.concatenate %34, %35, %36, %37, %38, %39, %40, %41 in 0 : vector<1x224xf32>, vector<1x224xf32>, vector<1x224xf32>, vector<1x224xf32>, vector<1x224xf32>, vector<1x224xf32>, vector<1x224xf32>, vector<1x224xf32> -> vector<8x224xf32>
    %43 = vector.extract_strided_slice %30 {offsets = [1, 0], sizes = [1, 224], strides = [1, 1]} : vector<10x224xf32> to vector<1x224xf32>
    %44 = vector.extract_strided_slice %30 {offsets = [3, 0], sizes = [1, 224], strides = [1, 1]} : vector<10x224xf32> to vector<1x224xf32>
    %45 = vector.extract_strided_slice %30 {offsets = [5, 0], sizes = [1, 224], strides = [1, 1]} : vector<10x224xf32> to vector<1x224xf32>
    %46 = vector.extract_strided_slice %30 {offsets = [7, 0], sizes = [1, 224], strides = [1, 1]} : vector<10x224xf32> to vector<1x224xf32>
    %47 = vector.extract_strided_slice %33 {offsets = [1, 0], sizes = [1, 224], strides = [1, 1]} : vector<10x224xf32> to vector<1x224xf32>
    %48 = vector.extract_strided_slice %33 {offsets = [3, 0], sizes = [1, 224], strides = [1, 1]} : vector<10x224xf32> to vector<1x224xf32>
    %49 = vector.extract_strided_slice %33 {offsets = [5, 0], sizes = [1, 224], strides = [1, 1]} : vector<10x224xf32> to vector<1x224xf32>
    %50 = vector.extract_strided_slice %33 {offsets = [7, 0], sizes = [1, 224], strides = [1, 1]} : vector<10x224xf32> to vector<1x224xf32>
    %51 = tpu.concatenate %43, %44, %45, %46, %47, %48, %49, %50 in 0 : vector<1x224xf32>, vector<1x224xf32>, vector<1x224xf32>, vector<1x224xf32>, vector<1x224xf32>, vector<1x224xf32>, vector<1x224xf32>, vector<1x224xf32> -> vector<8x224xf32>
    %52 = vector.extract_strided_slice %30 {offsets = [2, 0], sizes = [1, 224], strides = [1, 1]} : vector<10x224xf32> to vector<1x224xf32>
    %53 = vector.extract_strided_slice %30 {offsets = [4, 0], sizes = [1, 224], strides = [1, 1]} : vector<10x224xf32> to vector<1x224xf32>
    %54 = vector.extract_strided_slice %30 {offsets = [6, 0], sizes = [1, 224], strides = [1, 1]} : vector<10x224xf32> to vector<1x224xf32>
    %55 = vector.extract_strided_slice %30 {offsets = [8, 0], sizes = [1, 224], strides = [1, 1]} : vector<10x224xf32> to vector<1x224xf32>
    %56 = vector.extract_strided_slice %33 {offsets = [2, 0], sizes = [1, 224], strides = [1, 1]} : vector<10x224xf32> to vector<1x224xf32>
    %57 = vector.extract_strided_slice %33 {offsets = [4, 0], sizes = [1, 224], strides = [1, 1]} : vector<10x224xf32> to vector<1x224xf32>
    %58 = vector.extract_strided_slice %33 {offsets = [6, 0], sizes = [1, 224], strides = [1, 1]} : vector<10x224xf32> to vector<1x224xf32>
    %59 = vector.extract_strided_slice %33 {offsets = [8, 0], sizes = [1, 224], strides = [1, 1]} : vector<10x224xf32> to vector<1x224xf32>
    %60 = tpu.concatenate %52, %53, %54, %55, %56, %57, %58, %59 in 0 : vector<1x224xf32>, vector<1x224xf32>, vector<1x224xf32>, vector<1x224xf32>, vector<1x224xf32>, vector<1x224xf32>, vector<1x224xf32>, vector<1x224xf32> -> vector<8x224xf32>
    %61 = tpu.concatenate %42, %51, %60 in 1 : vector<8x224xf32>, vector<8x224xf32>, vector<8x224xf32> -> vector<8x672xf32>
    %62 = arith.truncf %61 : vector<8x672xf32> to vector<8x672xbf16>
    %cst_11 = arith.constant dense<0.000000e+00> : vector<8x240xf32>
    %63 = tpu.matmul %62, %26, %cst_11 {dimension_numbers = #tpu.dot_dimension_numbers<[1], [0], [0], [1], [0, 0, 1, 1], [], []>} : vector<8x672xbf16>, vector<672x240xbf16>, vector<8x240xf32> -> vector<8x240xf32>
    %64 = arith.extf %27 : vector<1x240xbf16> to vector<1x240xf32>
    %65 = vector.broadcast %64 : vector<1x240xf32> to vector<8x240xf32>
    %66 = arith.addf %63, %65 : vector<8x240xf32>
    %cst_12 = arith.constant 0.000000e+00 : f32
    %67 = vector.broadcast %cst_12 : f32 to vector<8x240xf32>
    %68 = arith.maximumf %66, %67 : vector<8x240xf32>
    %c768 = arith.constant 768 : index
    %c0_13 = arith.constant 0 : index
    %69 = vector.load %arg1[%c768, %c0_13] : memref<2384x288xbf16, #tpu.memory_space<vmem>>, vector<720x288xbf16>
    %c2368 = arith.constant 2368 : index
    %c0_14 = arith.constant 0 : index
    %70 = vector.load %arg1[%c2368, %c0_14] : memref<2384x288xbf16, #tpu.memory_space<vmem>>, vector<1x288xbf16>
    %71 = vector.extract_strided_slice %68 {offsets = [0, 0], sizes = [4, 240], strides = [1, 1]} : vector<8x240xf32> to vector<4x240xf32>
    %cst_15 = arith.constant 0.000000e+00 : f32
    %72 = vector.broadcast %cst_15 : f32 to vector<2x240xf32>
    %73 = tpu.concatenate %72, %71, %72 in 0 : vector<2x240xf32>, vector<4x240xf32>, vector<2x240xf32> -> vector<8x240xf32>
    %74 = vector.extract_strided_slice %68 {offsets = [4, 0], sizes = [4, 240], strides = [1, 1]} : vector<8x240xf32> to vector<4x240xf32>
    %cst_16 = arith.constant 0.000000e+00 : f32
    %75 = vector.broadcast %cst_16 : f32 to vector<2x240xf32>
    %76 = tpu.concatenate %75, %74, %75 in 0 : vector<2x240xf32>, vector<4x240xf32>, vector<2x240xf32> -> vector<8x240xf32>
    %77 = vector.extract_strided_slice %73 {offsets = [0, 0], sizes = [1, 240], strides = [1, 1]} : vector<8x240xf32> to vector<1x240xf32>
    %78 = vector.extract_strided_slice %73 {offsets = [2, 0], sizes = [1, 240], strides = [1, 1]} : vector<8x240xf32> to vector<1x240xf32>
    %79 = vector.extract_strided_slice %73 {offsets = [4, 0], sizes = [1, 240], strides = [1, 1]} : vector<8x240xf32> to vector<1x240xf32>
    %80 = vector.extract_strided_slice %76 {offsets = [0, 0], sizes = [1, 240], strides = [1, 1]} : vector<8x240xf32> to vector<1x240xf32>
    %81 = vector.extract_strided_slice %76 {offsets = [2, 0], sizes = [1, 240], strides = [1, 1]} : vector<8x240xf32> to vector<1x240xf32>
    %82 = vector.extract_strided_slice %76 {offsets = [4, 0], sizes = [1, 240], strides = [1, 1]} : vector<8x240xf32> to vector<1x240xf32>
    %83 = tpu.concatenate %77, %78, %79, %80, %81, %82 in 0 : vector<1x240xf32>, vector<1x240xf32>, vector<1x240xf32>, vector<1x240xf32>, vector<1x240xf32>, vector<1x240xf32> -> vector<6x240xf32>
    %84 = vector.extract_strided_slice %73 {offsets = [1, 0], sizes = [1, 240], strides = [1, 1]} : vector<8x240xf32> to vector<1x240xf32>
    %85 = vector.extract_strided_slice %73 {offsets = [3, 0], sizes = [1, 240], strides = [1, 1]} : vector<8x240xf32> to vector<1x240xf32>
    %86 = vector.extract_strided_slice %73 {offsets = [5, 0], sizes = [1, 240], strides = [1, 1]} : vector<8x240xf32> to vector<1x240xf32>
    %87 = vector.extract_strided_slice %76 {offsets = [1, 0], sizes = [1, 240], strides = [1, 1]} : vector<8x240xf32> to vector<1x240xf32>
    %88 = vector.extract_strided_slice %76 {offsets = [3, 0], sizes = [1, 240], strides = [1, 1]} : vector<8x240xf32> to vector<1x240xf32>
    %89 = vector.extract_strided_slice %76 {offsets = [5, 0], sizes = [1, 240], strides = [1, 1]} : vector<8x240xf32> to vector<1x240xf32>
    %90 = tpu.concatenate %84, %85, %86, %87, %88, %89 in 0 : vector<1x240xf32>, vector<1x240xf32>, vector<1x240xf32>, vector<1x240xf32>, vector<1x240xf32>, vector<1x240xf32> -> vector<6x240xf32>
    %91 = vector.extract_strided_slice %73 {offsets = [2, 0], sizes = [1, 240], strides = [1, 1]} : vector<8x240xf32> to vector<1x240xf32>
    %92 = vector.extract_strided_slice %73 {offsets = [4, 0], sizes = [1, 240], strides = [1, 1]} : vector<8x240xf32> to vector<1x240xf32>
    %93 = vector.extract_strided_slice %73 {offsets = [6, 0], sizes = [1, 240], strides = [1, 1]} : vector<8x240xf32> to vector<1x240xf32>
    %94 = vector.extract_strided_slice %76 {offsets = [2, 0], sizes = [1, 240], strides = [1, 1]} : vector<8x240xf32> to vector<1x240xf32>
    %95 = vector.extract_strided_slice %76 {offsets = [4, 0], sizes = [1, 240], strides = [1, 1]} : vector<8x240xf32> to vector<1x240xf32>
    %96 = vector.extract_strided_slice %76 {offsets = [6, 0], sizes = [1, 240], strides = [1, 1]} : vector<8x240xf32> to vector<1x240xf32>
    %97 = tpu.concatenate %91, %92, %93, %94, %95, %96 in 0 : vector<1x240xf32>, vector<1x240xf32>, vector<1x240xf32>, vector<1x240xf32>, vector<1x240xf32>, vector<1x240xf32> -> vector<6x240xf32>
    %98 = tpu.concatenate %83, %90, %97 in 1 : vector<6x240xf32>, vector<6x240xf32>, vector<6x240xf32> -> vector<6x720xf32>
    %99 = arith.truncf %98 : vector<6x720xf32> to vector<6x720xbf16>
    %cst_17 = arith.constant dense<0.000000e+00> : vector<6x288xf32>
    %100 = tpu.matmul %99, %69, %cst_17 {dimension_numbers = #tpu.dot_dimension_numbers<[1], [0], [0], [1], [0, 0, 1, 1], [], []>} : vector<6x720xbf16>, vector<720x288xbf16>, vector<6x288xf32> -> vector<6x288xf32>
    %101 = arith.extf %70 : vector<1x288xbf16> to vector<1x288xf32>
    %102 = vector.broadcast %101 : vector<1x288xf32> to vector<6x288xf32>
    %103 = arith.addf %100, %102 : vector<6x288xf32>
    %cst_18 = arith.constant 0.000000e+00 : f32
    %104 = vector.broadcast %cst_18 : f32 to vector<6x288xf32>
    %105 = arith.maximumf %103, %104 : vector<6x288xf32>
    %106 = vector.extract_strided_slice %105 {offsets = [0, 0], sizes = [1, 288], strides = [1, 1]} : vector<6x288xf32> to vector<1x288xf32>
    %107 = vector.extract_strided_slice %105 {offsets = [1, 0], sizes = [1, 288], strides = [1, 1]} : vector<6x288xf32> to vector<1x288xf32>
    %108 = vector.extract_strided_slice %105 {offsets = [2, 0], sizes = [1, 288], strides = [1, 1]} : vector<6x288xf32> to vector<1x288xf32>
    %109 = tpu.concatenate %106, %107, %108 in 1 : vector<1x288xf32>, vector<1x288xf32>, vector<1x288xf32> -> vector<1x864xf32>
    %110 = vector.extract_strided_slice %105 {offsets = [3, 0], sizes = [1, 288], strides = [1, 1]} : vector<6x288xf32> to vector<1x288xf32>
    %111 = vector.extract_strided_slice %105 {offsets = [4, 0], sizes = [1, 288], strides = [1, 1]} : vector<6x288xf32> to vector<1x288xf32>
    %112 = vector.extract_strided_slice %105 {offsets = [5, 0], sizes = [1, 288], strides = [1, 1]} : vector<6x288xf32> to vector<1x288xf32>
    %113 = tpu.concatenate %110, %111, %112 in 1 : vector<1x288xf32>, vector<1x288xf32>, vector<1x288xf32> -> vector<1x864xf32>
    %114 = tpu.concatenate %109, %113 in 0 : vector<1x864xf32>, vector<1x864xf32> -> vector<2x864xf32>
    %c1488 = arith.constant 1488 : index
    %c0_19 = arith.constant 0 : index
    %115 = vector.load %arg1[%c1488, %c0_19] : memref<2384x288xbf16, #tpu.memory_space<vmem>>, vector<864x128xbf16>
    %c2376 = arith.constant 2376 : index
    %c0_20 = arith.constant 0 : index
    %116 = vector.load %arg1[%c2376, %c0_20] : memref<2384x288xbf16, #tpu.memory_space<vmem>>, vector<1x128xbf16>
    %117 = arith.truncf %114 : vector<2x864xf32> to vector<2x864xbf16>
    %cst_21 = arith.constant dense<0.000000e+00> : vector<2x128xf32>
    %118 = tpu.matmul %117, %115, %cst_21 {dimension_numbers = #tpu.dot_dimension_numbers<[1], [0], [0], [1], [0, 0, 1, 1], [], []>} : vector<2x864xbf16>, vector<864x128xbf16>, vector<2x128xf32> -> vector<2x128xf32>
    %119 = arith.extf %116 : vector<1x128xbf16> to vector<1x128xf32>
    %120 = vector.broadcast %119 : vector<1x128xf32> to vector<2x128xf32>
    %121 = arith.addf %118, %120 : vector<2x128xf32>
    %c0_22 = arith.constant 0 : index
    %c0_23 = arith.constant 0 : index
    %122 = vector.load %arg2[%c0_22, %c0_23] : memref<2x128xf32, #tpu.memory_space<vmem>>, vector<2x128xf32>
    tpu.vector_store %arg2[%c0_22, %c0_23], %121 {strides = array<i32>} : memref<2x128xf32, #tpu.memory_space<vmem>>, vector<2x128xf32>,
    return
  }
}

</mosaic_0001>

<llo_original>
// kernel: convnet2d_forward.1
$region0: #{convnet2d_forward.1}
  #allocation0 [shape = 'u32[]', space=smem, size = 0x4, offset = 0x4, fixed_abs, tag = 'smem constant byte address 0x4 - core index']
  #allocation1 [shape = 'u32[144,128]{1,0:T(1,128)}', space=vmem, size = 0x12000, scoped, tag = 'internal scratch']
  %s0 = inlined_call_operand.vmem [shape: f32[12,28], index: 0, kind: input, shape index: {}]
  %s1 = inlined_call_operand.vmem [shape: bf16[2384,288], index: 1, kind: input, shape index: {}]
  %s2 = inlined_call_operand.hbm [shape: f32[2,128], index: 2, kind: output, shape index: {}]
  %s3 = sld [smem:[#allocation0]]
  $region18: #{convnet2d_forward.1} parent=0
    _
  %s5 = ssub.s32 1, %s3
  %s6 = scalar_select 0, %s5, %s3
  $region1: #{convnet2d_forward.1} parent=0
    #allocation2 [shape = 'u8[1024]{0}', space=vmem, size = 0x400, scoped, tag = 'output window, operand 0, single buffered']
    #allocation3 [shape = 's32[1]{0}', space=sflag, size = 0x4, scoped, tag = 'scoped memory for convnet2d_forward.1']
    %7 = vsyncpa [#allocation3], 0
    // Predicated region
    $region2: #{convnet2d_forward.1} parent=1 // pred_check
      _
    $region3: #{convnet2d_forward.1} parent=1 // pred_check_branch
      %9 = sbr.rel (0) target = $region5
    $region4: #{convnet2d_forward.1} parent=1 // pred_region
      _
    $region5: #{convnet2d_forward.1} parent=1 // pred_fallthru
      _
    // Predicated region
    $region6: #{convnet2d_forward.1} parent=1 // pred_check
      _
    $region7: #{convnet2d_forward.1} parent=1 // pred_check_branch
      %11 = sbr.rel (0) target = $region9
    $region8: #{convnet2d_forward.1} parent=1 // pred_region
      _
    $region9: #{convnet2d_forward.1} parent=1 // pred_fallthru
      _
    %v13 = vld [vmem:[%s0] sm:$0xff]
    %v14 = vld [vmem:[%s0 + $0x8] sm:$0xf]
    %v15 = vld [vmem:[%s1] sm:$0xff]
    %v16 = vld [vmem:[%s1 + $0xc] sm:$0xff]
    %v17 = vld [vmem:[%s1 + $0x18] sm:$0xff]
    %v18 = vld [vmem:[%s1 + $0x24] sm:$0xff]
    %v19 = vld [vmem:[%s1 + $0x30] sm:$0xff]
    %v20 = vld [vmem:[%s1 + $0x3c] sm:$0xff]
    %v21 = vld [vmem:[%s1 + $0x48] sm:$0xff]
    %v22 = vld [vmem:[%s1 + $0x54] sm:$0xff]
    %v23 = vld [vmem:[%s1 + $0x60] sm:$0xff]
    %v24 = vld [vmem:[%s1 + $0x6c] sm:$0xff]
    %v25 = vld [vmem:[%s1 + $0x78] sm:$0x33]
    %v26 = vld [vmem:[%s1 + $0xdc8] sm:$0x11]
    %v28 = vrot.slane %v13, 7
    %vm30 = vcmask 1040384
    %v31 = vsel %vm30, 0.0, %v28
    %vm32 = vcmask 1046528
    %v33 = vsel %vm32, %v31, 0.0
    %vm35 = vcmask 1042432
    %v36 = vrot.slane %v13, 5
    %v37 = vrot.slane %v14, 5
    %v38 = vsel %vm35, %v36, %v37
    %v40 = vsel %vm30, 0.0, %v38
    %v41 = vsel %vm32, %v40, 0.0
    %v43 = vrot.slane %v41, 2
    %vm45 = vcmask 1045504
    %v46 = vsel %vm45, %v33, %v43
    %v48 = vrot.slane %v33, 1
    %v50 = vrot.slane %v41, 3
    %v52 = vsel %vm45, %v48, %v50
    %v53 = vrot.slane %v33, 2
    %v55 = vrot.slane %v41, 4
    %v57 = vsel %vm45, %v53, %v55
    %59 = vrot.lane.b32.xlu0 %v52, 28
    %v60 = vpop.permute.xlu0 %59
    %61 = vrot.lane.b32.xlu0 %v50, 28
    %v62 = vpop.permute.xlu0 %61
    %66 = vrot.lane.b32.xlu0 %v57, 56
    %v67 = vpop.permute.xlu0 %66
    %68 = vrot.lane.b32.xlu0 %v55, 56
    %v69 = vpop.permute.xlu0 %68
    %vm72 = vcmask 228352
    %v73 = vsel %vm72, %v46, %v60
    %v74 = vsel %vm72, %v43, %v62
    %vm75 = vcmask 457728
    %v76 = vsel %vm75, %v73, %v67
    %v77 = vsel %vm75, %v74, %v69
    %v78 = vpack.c.bf16 %v77, %v76
    %v79 = vunpack.c.l.bf16 %v26
    %v80 = vunpack.c.h.bf16 %v26
    %v81 = vlaneseq
    %v82 = vshrl.u32 %v81, 7
    %v83 = vsub.s32 0, %v82
    %v84 = vrot.slane %v79, %v83
    %v85 = vlaneseq
    %v86 = vshrl.u32 %v85, 7
    %v87 = vsub.s32 0, %v86
    %v88 = vrot.slane %v80, %v87
    %v100 = vunpack.c.l.b16 %v15
    %v101 = vunpack.c.h.b16 %v15
    %v102 = vunpack.c.l.b16 %v16
    %v103 = vunpack.c.h.b16 %v16
    %v104 = vunpack.c.l.b16 %v17
    %v105 = vunpack.c.h.b16 %v17
    %v106 = vunpack.c.l.b16 %v18
    %v107 = vunpack.c.h.b16 %v18
    %v108 = vunpack.c.l.b16 %v19
    %v109 = vunpack.c.h.b16 %v19
    %v110 = vunpack.c.l.b16 %v20
    %v111 = vunpack.c.h.b16 %v20
    %v112 = vunpack.c.l.b16 %v21
    %v113 = vunpack.c.h.b16 %v21
    %v114 = vunpack.c.l.b16 %v22
    %v115 = vunpack.c.h.b16 %v22
    %v116 = vunpack.c.l.b16 %v23
    %v117 = vunpack.c.h.b16 %v23
    %v118 = vunpack.c.l.b16 %v24
    %v119 = vunpack.c.h.b16 %v24
    %v120 = vunpack.c.l.b16 %v25
    %v121 = vunpack.c.h.b16 %v25
    %v122 = vpack.c.b16 %v102, %v100
    %v123 = vpack.c.b16 %v103, %v101
    %v124 = vpack.c.b16 %v106, %v104
    %v125 = vpack.c.b16 %v107, %v105
    %v126 = vpack.c.b16 %v110, %v108
    %v127 = vpack.c.b16 %v111, %v109
    %v128 = vpack.c.b16 %v114, %v112
    %v129 = vpack.c.b16 %v115, %v113
    %v130 = vpack.c.b16 %v118, %v116
    %v131 = vpack.c.b16 %v119, %v117
    %v132 = vpack.c.b16 %v120, %v120
    %v133 = vpack.c.b16 %v121, %v121
    %vm144 = vcmask 687104
    %v146 = vsel %vm144, %v78, 0
    %vm148 = vcmask 1041408
    %v150 = vsel %vm148, %v132, 0
    %v153 = vsel %vm148, %v133, 0
    %155 = vmatprep.subr.bf16.mxu0 %v123
    %156 = vmatpush1.bf16.msra.mxu0 %v122
    %157 = vmatprep.subr.bf16.mxu0 %v125
    %158 = vmatpush1.bf16.msra.mxu0 %v124
    %159 = vmatprep.subr.bf16.mxu0 %v127
    %160 = vmatpush1.bf16.msra.mxu0 %v126
    %161 = vmatprep.subr.bf16.mxu0 %v129
    %162 = vmatpush1.bf16.msra.mxu0 %v128
    %163 = vmatprep.subr.bf16.mxu0 %v131
    %164 = vmatpush1.bf16.msra.mxu0 %v130
    %165 = vmatprep.subr.bf16.mxu0 %v153
    %166 = vmatpush1.bf16.msra.mxu0 %v150
    %167 = vmatprep.subr.bf16.mxu0 0
    %168 = vmatpush1.bf16.msra.mxu0 0
    %169 = vmatprep.subr.bf16.mxu0 0
    %170 = vmatpush1.bf16.msra.mxu0 0
    %171 = vmatprep.subr.bf16.mxu0 0
    %172 = vmatpush1.bf16.msra.mxu0 0
    %173 = vmatprep.subr.bf16.mxu0 0
    %174 = vmatpush1.bf16.msra.mxu0 0
    %175 = vmatprep.subr.bf16.mxu0 0
    %176 = vmatpush1.bf16.msra.mxu0 0
    %177 = vmatprep.subr.bf16.mxu0 0
    %178 = vmatpush1.bf16.msra.mxu0 0
    %179 = vmatprep.subr.bf16.mxu0 0
    %180 = vmatpush1.bf16.msra.mxu0 0
    %181 = vmatprep.subr.bf16.mxu0 0
    %182 = vmatpush1.bf16.msra.mxu0 0
    %183 = vmatprep.subr.bf16.mxu0 0
    %184 = vmatpush1.bf16.msra.mxu0 0
    %185 = vmatprep.subr.bf16.mxu0 0
    %186 = vmatpush1.bf16.msra.mxu0 0
    %187 = vmatprep.mubr.bf16.mxu0 0
    %188 = vmatmul.mubr.bf16.gmra.mrb[0].mxu0 %v146
    %v189 = vpop.f32.mrb[0].mxu0
    %v190 = vadd.f32 %v84, %v189
    %v191 = vpop.f32.mrb[0].mxu0
    %v192 = vadd.f32 %v88, %v191
    %v193 = vpop.f32.mrb[0].mxu0
    %v194 = vadd.f32 %v84, %v193
    %v195 = vpop.f32.mrb[0].mxu0
    %v196 = vadd.f32 %v88, %v195
    %197 = vdwg.mxu0
    %v198 = vmax.f32 %v190, 0.0
    %v199 = vmax.f32 %v192, 0.0
    %v200 = vmax.f32 %v194, 0.0
    %v201 = vmax.f32 %v196, 0.0
    %v202 = vld [vmem:[%s1 + $0x90] sm:$0xff]
    %v203 = vld [vmem:[%s1 + $0x9c] sm:$0xff]
    %v204 = vld [vmem:[%s1 + $0xa8] sm:$0xff]
    %v205 = vld [vmem:[%s1 + $0xb4] sm:$0xff]
    %v206 = vld [vmem:[%s1 + $0xc0] sm:$0xff]
    %v207 = vld [vmem:[%s1 + $0xcc] sm:$0xff]
    %v208 = vld [vmem:[%s1 + $0xd8] sm:$0xff]
    %v209 = vld [vmem:[%s1 + $0xe4] sm:$0xff]
    %v210 = vld [vmem:[%s1 + $0xf0] sm:$0xff]
    %v211 = vld [vmem:[%s1 + $0xfc] sm:$0xff]
    %v212 = vld [vmem:[%s1 + $0x108] sm:$0xff]
    %v213 = vld [vmem:[%s1 + $0x114] sm:$0xff]
    %v214 = vld [vmem:[%s1 + $0x120] sm:$0xff]
    %v215 = vld [vmem:[%s1 + $0x12c] sm:$0xff]
    %v216 = vld [vmem:[%s1 + $0x138] sm:$0xff]
    %v217 = vld [vmem:[%s1 + $0x144] sm:$0xff]
    %v218 = vld [vmem:[%s1 + $0x150] sm:$0xff]
    %v219 = vld [vmem:[%s1 + $0x15c] sm:$0xff]
    %v220 = vld [vmem:[%s1 + $0x168] sm:$0xff]
    %v221 = vld [vmem:[%s1 + $0x174] sm:$0xff]
    %v222 = vld [vmem:[%s1 + $0x180] sm:$0xff]
    %v223 = vld [vmem:[%s1 + $0x18c] sm:$0xff]
    %v224 = vld [vmem:[%s1 + $0x198] sm:$0xff]
    %v225 = vld [vmem:[%s1 + $0x1a4] sm:$0xff]
    %v226 = vld [vmem:[%s1 + $0x1b0] sm:$0xff]
    %v227 = vld [vmem:[%s1 + $0x1bc] sm:$0xff]
    %v228 = vld [vmem:[%s1 + $0x1c8] sm:$0xff]
    %v229 = vld [vmem:[%s1 + $0x1d4] sm:$0xff]
    %v230 = vld [vmem:[%s1 + $0x1e0] sm:$0xff]
    %v231 = vld [vmem:[%s1 + $0x1ec] sm:$0xff]
    %v232 = vld [vmem:[%s1 + $0x1f8] sm:$0xff]
    %v233 = vld [vmem:[%s1 + $0x204] sm:$0xff]
    %v234 = vld [vmem:[%s1 + $0x210] sm:$0xff]
    %v235 = vld [vmem:[%s1 + $0x21c] sm:$0xff]
    %v236 = vld [vmem:[%s1 + $0x228] sm:$0xff]
    %v237 = vld [vmem:[%s1 + $0x234] sm:$0xff]
    %v238 = vld [vmem:[%s1 + $0x240] sm:$0xff]
    %v239 = vld [vmem:[%s1 + $0x24c] sm:$0xff]
    %v240 = vld [vmem:[%s1 + $0x258] sm:$0xff]
    %v241 = vld [vmem:[%s1 + $0x264] sm:$0xff]
    %v242 = vld [vmem:[%s1 + $0x270] sm:$0xff]
    %v243 = vld [vmem:[%s1 + $0x27c] sm:$0xff]
    %v244 = vld [vmem:[%s1 + $0x288] sm:$0xff]
    %v245 = vld [vmem:[%s1 + $0x294] sm:$0xff]
    %v246 = vld [vmem:[%s1 + $0x2a0] sm:$0xff]
    %v247 = vld [vmem:[%s1 + $0x2ac] sm:$0xff]
    %v248 = vld [vmem:[%s1 + $0x2b8] sm:$0xff]
    %v249 = vld [vmem:[%s1 + $0x2c4] sm:$0xff]
    %v250 = vld [vmem:[%s1 + $0x2d0] sm:$0xff]
    %v251 = vld [vmem:[%s1 + $0x2dc] sm:$0xff]
    %v252 = vld [vmem:[%s1 + $0x2e8] sm:$0xff]
    %v253 = vld [vmem:[%s1 + $0x2f4] sm:$0xff]
    %v254 = vld [vmem:[%s1 + $0x300] sm:$0xff]
    %v255 = vld [vmem:[%s1 + $0x30c] sm:$0xff]
    %v256 = vld [vmem:[%s1 + $0x318] sm:$0xff]
    %v257 = vld [vmem:[%s1 + $0x324] sm:$0xff]
    %v258 = vld [vmem:[%s1 + $0x330] sm:$0xff]
    %v259 = vld [vmem:[%s1 + $0x33c] sm:$0xff]
    %v260 = vld [vmem:[%s1 + $0x348] sm:$0xff]
    %v261 = vld [vmem:[%s1 + $0x354] sm:$0xff]
    %v262 = vld [vmem:[%s1 + $0x360] sm:$0xff]
    %v263 = vld [vmem:[%s1 + $0x36c] sm:$0xff]
    %v264 = vld [vmem:[%s1 + $0x378] sm:$0xff]
    %v265 = vld [vmem:[%s1 + $0x384] sm:$0xff]
    %v266 = vld [vmem:[%s1 + $0x390] sm:$0xff]
    %v267 = vld [vmem:[%s1 + $0x39c] sm:$0xff]
    %v268 = vld [vmem:[%s1 + $0x3a8] sm:$0xff]
    %v269 = vld [vmem:[%s1 + $0x3b4] sm:$0xff]
    %v270 = vld [vmem:[%s1 + $0x3c0] sm:$0xff]
    %v271 = vld [vmem:[%s1 + $0x3cc] sm:$0xff]
    %v272 = vld [vmem:[%s1 + $0x3d8] sm:$0xff]
    %v273 = vld [vmem:[%s1 + $0x3e4] sm:$0xff]
    %v274 = vld [vmem:[%s1 + $0x3f0] sm:$0xff]
    %v275 = vld [vmem:[%s1 + $0x3fc] sm:$0xff]
    %v276 = vld [vmem:[%s1 + $0x408] sm:$0xff]
    %v277 = vld [vmem:[%s1 + $0x414] sm:$0xff]
    %v278 = vld [vmem:[%s1 + $0x420] sm:$0xff]
    %v279 = vld [vmem:[%s1 + $0x42c] sm:$0xff]
    %v280 = vld [vmem:[%s1 + $0x438] sm:$0xff]
    %v281 = vld [vmem:[%s1 + $0x444] sm:$0xff]
    %v282 = vld [vmem:[%s1 + $0x450] sm:$0xff]
    %v283 = vld [vmem:[%s1 + $0x45c] sm:$0xff]
    %v284 = vld [vmem:[%s1 + $0x468] sm:$0xff]
    %v285 = vld [vmem:[%s1 + $0x474] sm:$0xff]
    %v286 = vld [vmem:[%s1 + $0xdd4] sm:$0x11]
    %v289 = vrot.slane %v198, 6
    %v290 = vrot.slane %v199, 6
    %v293 = vsel %vm148, 0.0, %v289
    %v294 = vsel %vm148, 0.0, %v290
    %vm297 = vcmask 1043456
    %v298 = vrot.slane %v198, 4
    %v299 = vrot.slane %v200, 4
    %v300 = vsel %vm297, %v298, %v299
    %v301 = vrot.slane %v199, 4
    %v302 = vrot.slane %v201, 4
    %v303 = vsel %vm297, %v301, %v302
    %v306 = vsel %vm148, 0.0, %v300
    %v307 = vsel %vm148, 0.0, %v303
    %v310 = vrot.slane %v293, 1
    %v311 = vrot.slane %v294, 1
    %v314 = vrot.slane %v293, 2
    %v315 = vrot.slane %v294, 2
    %v318 = vrot.slane %v293, 3
    %v319 = vrot.slane %v294, 3
    %v324 = vrot.slane %v306, 4
    %v325 = vrot.slane %v307, 4
    %v328 = vrot.slane %v306, 5
    %v329 = vrot.slane %v307, 5
    %v332 = vrot.slane %v306, 6
    %v333 = vrot.slane %v307, 6
    %v336 = vrot.slane %v306, 7
    %v337 = vrot.slane %v307, 7
    %v340 = vsel %vm30, %v293, %v310
    %v341 = vsel %vm30, %v294, %v311
    %v342 = vsel %vm148, %v340, %v314
    %v343 = vsel %vm148, %v341, %v315
    %v344 = vsel %vm35, %v342, %v318
    %v345 = vsel %vm35, %v343, %v319
    %v346 = vsel %vm297, %v344, %v324
    %v347 = vsel %vm297, %v345, %v325
    %vm348 = vcmask 1044480
    %v349 = vsel %vm348, %v346, %v328
    %v350 = vsel %vm348, %v347, %v329
    %v351 = vsel %vm45, %v349, %v332
    %v352 = vsel %vm45, %v350, %v333
    %v353 = vsel %vm32, %v351, %v336
    %v354 = vsel %vm32, %v352, %v337
    %v355 = vrot.slane %v293, 4
    %v356 = vrot.slane %v294, 4
    %v359 = vsel %vm30, %v310, %v314
    %v360 = vsel %vm30, %v311, %v315
    %v361 = vsel %vm148, %v359, %v318
    %v362 = vsel %vm148, %v360, %v319
    %v363 = vsel %vm35, %v361, %v355
    %v364 = vsel %vm35, %v362, %v356
    %v365 = vsel %vm297, %v363, %v328
    %v366 = vsel %vm297, %v364, %v329
    %v367 = vsel %vm348, %v365, %v332
    %v368 = vsel %vm348, %v366, %v333
    %v369 = vsel %vm45, %v367, %v336
    %v370 = vsel %vm45, %v368, %v337
    %v371 = vsel %vm32, %v369, %v306
    %v372 = vsel %vm32, %v370, %v307
    %v374 = vrot.slane 0.0, 5
    %v376 = vrot.slane 0.0, 1
    %v378 = vsel %vm30, %v314, %v318
    %v379 = vsel %vm30, %v315, %v319
    %v380 = vsel %vm148, %v378, %v355
    %v381 = vsel %vm148, %v379, %v356
    %v382 = vsel %vm35, %v380, %v374
    %v383 = vsel %vm35, %v381, %v374
    %v384 = vsel %vm297, %v382, %v332
    %v385 = vsel %vm297, %v383, %v333
    %v386 = vsel %vm348, %v384, %v336
    %v387 = vsel %vm348, %v385, %v337
    %v388 = vsel %vm45, %v386, %v306
    %v389 = vsel %vm45, %v387, %v307
    %v390 = vsel %vm32, %v388, %v376
    %v391 = vsel %vm32, %v389, %v376
    %394 = vrot.lane.b32.xlu0 %v371, 96
    %v395 = vpop.permute.xlu0 %394
    %396 = vrot.lane.b32.xlu0 %v372, 96
    %v397 = vpop.permute.xlu0 %396
    %vm398 = vcmask 785408
    %v399 = vsel %vm398, %v395, %v397
    %405 = vrot.lane.b32.xlu0 %v390, 64
    %v406 = vpop.permute.xlu0 %405
    %407 = vrot.lane.b32.xlu0 %v391, 64
    %v408 = vpop.permute.xlu0 %407
    %vm409 = vcmask 523264
    %v410 = vsel %vm409, %v406, %v408
    %v414 = vsel %vm398, %v354, %v395
    %v415 = vsel %vm409, %v397, %v406
    %v416 = vpack.c.bf16 %v353, %v353
    %v417 = vpack.c.bf16 %v414, %v414
    %v418 = vpack.c.bf16 %v399, %v399
    %v419 = vpack.c.bf16 %v415, %v415
    %v420 = vpack.c.bf16 %v410, %v410
    %v421 = vpack.c.bf16 %v408, %v408
    %v422 = vunpack.c.l.bf16 %v286
    %v423 = vunpack.c.h.bf16 %v286
    %v424 = vlaneseq
    %v425 = vshrl.u32 %v424, 7
    %v426 = vsub.s32 0, %v425
    %v427 = vrot.slane %v422, %v426
    %v428 = vlaneseq
    %v429 = vshrl.u32 %v428, 7
    %v430 = vsub.s32 0, %v429
    %v431 = vrot.slane %v423, %v430
    %v516 = vunpack.c.l.b16 %v202
    %v517 = vunpack.c.h.b16 %v202
    %v518 = vunpack.c.l.b16 %v203
    %v519 = vunpack.c.h.b16 %v203
    %v520 = vunpack.c.l.b16 %v204
    %v521 = vunpack.c.h.b16 %v204
    %v522 = vunpack.c.l.b16 %v205
    %v523 = vunpack.c.h.b16 %v205
    %v524 = vunpack.c.l.b16 %v206
    %v525 = vunpack.c.h.b16 %v206
    %v526 = vunpack.c.l.b16 %v207
    %v527 = vunpack.c.h.b16 %v207
    %v528 = vunpack.c.l.b16 %v208
    %v529 = vunpack.c.h.b16 %v208
    %v530 = vunpack.c.l.b16 %v209
    %v531 = vunpack.c.h.b16 %v209
    %v532 = vunpack.c.l.b16 %v210
    %v533 = vunpack.c.h.b16 %v210
    %v534 = vunpack.c.l.b16 %v211
    %v535 = vunpack.c.h.b16 %v211
    %v536 = vunpack.c.l.b16 %v212
    %v537 = vunpack.c.h.b16 %v212
    %v538 = vunpack.c.l.b16 %v213
    %v539 = vunpack.c.h.b16 %v213
    %v540 = vunpack.c.l.b16 %v214
    %v541 = vunpack.c.h.b16 %v214
    %v542 = vunpack.c.l.b16 %v215
    %v543 = vunpack.c.h.b16 %v215
    %v544 = vunpack.c.l.b16 %v216
    %v545 = vunpack.c.h.b16 %v216
    %v546 = vunpack.c.l.b16 %v217
    %v547 = vunpack.c.h.b16 %v217
    %v548 = vunpack.c.l.b16 %v218
    %v549 = vunpack.c.h.b16 %v218
    %v550 = vunpack.c.l.b16 %v219
    %v551 = vunpack.c.h.b16 %v219
    %v552 = vunpack.c.l.b16 %v220
    %v553 = vunpack.c.h.b16 %v220
    %v554 = vunpack.c.l.b16 %v221
    %v555 = vunpack.c.h.b16 %v221
    %v556 = vunpack.c.l.b16 %v222
    %v557 = vunpack.c.h.b16 %v222
    %v558 = vunpack.c.l.b16 %v223
    %v559 = vunpack.c.h.b16 %v223
    %v560 = vunpack.c.l.b16 %v224
    %v561 = vunpack.c.h.b16 %v224
    %v562 = vunpack.c.l.b16 %v225
    %v563 = vunpack.c.h.b16 %v225
    %v564 = vunpack.c.l.b16 %v226
    %v565 = vunpack.c.h.b16 %v226
    %v566 = vunpack.c.l.b16 %v227
    %v567 = vunpack.c.h.b16 %v227
    %v568 = vunpack.c.l.b16 %v228
    %v569 = vunpack.c.h.b16 %v228
    %v570 = vunpack.c.l.b16 %v229
    %v571 = vunpack.c.h.b16 %v229
    %v572 = vunpack.c.l.b16 %v230
    %v573 = vunpack.c.h.b16 %v230
    %v574 = vunpack.c.l.b16 %v231
    %v575 = vunpack.c.h.b16 %v231
    %v576 = vunpack.c.l.b16 %v232
    %v577 = vunpack.c.h.b16 %v232
    %v578 = vunpack.c.l.b16 %v233
    %v579 = vunpack.c.h.b16 %v233
    %v580 = vunpack.c.l.b16 %v234
    %v581 = vunpack.c.h.b16 %v234
    %v582 = vunpack.c.l.b16 %v235
    %v583 = vunpack.c.h.b16 %v235
    %v584 = vunpack.c.l.b16 %v236
    %v585 = vunpack.c.h.b16 %v236
    %v586 = vunpack.c.l.b16 %v237
    %v587 = vunpack.c.h.b16 %v237
    %v588 = vunpack.c.l.b16 %v238
    %v589 = vunpack.c.h.b16 %v238
    %v590 = vunpack.c.l.b16 %v239
    %v591 = vunpack.c.h.b16 %v239
    %v592 = vunpack.c.l.b16 %v240
    %v593 = vunpack.c.h.b16 %v240
    %v594 = vunpack.c.l.b16 %v241
    %v595 = vunpack.c.h.b16 %v241
    %v596 = vunpack.c.l.b16 %v242
    %v597 = vunpack.c.h.b16 %v242
    %v598 = vunpack.c.l.b16 %v243
    %v599 = vunpack.c.h.b16 %v243
    %v600 = vunpack.c.l.b16 %v244
    %v601 = vunpack.c.h.b16 %v244
    %v602 = vunpack.c.l.b16 %v245
    %v603 = vunpack.c.h.b16 %v245
    %v604 = vunpack.c.l.b16 %v246
    %v605 = vunpack.c.h.b16 %v246
    %v606 = vunpack.c.l.b16 %v247
    %v607 = vunpack.c.h.b16 %v247
    %v608 = vunpack.c.l.b16 %v248
    %v609 = vunpack.c.h.b16 %v248
    %v610 = vunpack.c.l.b16 %v249
    %v611 = vunpack.c.h.b16 %v249
    %v612 = vunpack.c.l.b16 %v250
    %v613 = vunpack.c.h.b16 %v250
    %v614 = vunpack.c.l.b16 %v251
    %v615 = vunpack.c.h.b16 %v251
    %v616 = vunpack.c.l.b16 %v252
    %v617 = vunpack.c.h.b16 %v252
    %v618 = vunpack.c.l.b16 %v253
    %v619 = vunpack.c.h.b16 %v253
    %v620 = vunpack.c.l.b16 %v254
    %v621 = vunpack.c.h.b16 %v254
    %v622 = vunpack.c.l.b16 %v255
    %v623 = vunpack.c.h.b16 %v255
    %v624 = vunpack.c.l.b16 %v256
    %v625 = vunpack.c.h.b16 %v256
    %v626 = vunpack.c.l.b16 %v257
    %v627 = vunpack.c.h.b16 %v257
    %v628 = vunpack.c.l.b16 %v258
    %v629 = vunpack.c.h.b16 %v258
    %v630 = vunpack.c.l.b16 %v259
    %v631 = vunpack.c.h.b16 %v259
    %v632 = vunpack.c.l.b16 %v260
    %v633 = vunpack.c.h.b16 %v260
    %v634 = vunpack.c.l.b16 %v261
    %v635 = vunpack.c.h.b16 %v261
    %v636 = vunpack.c.l.b16 %v262
    %v637 = vunpack.c.h.b16 %v262
    %v638 = vunpack.c.l.b16 %v263
    %v639 = vunpack.c.h.b16 %v263
    %v640 = vunpack.c.l.b16 %v264
    %v641 = vunpack.c.h.b16 %v264
    %v642 = vunpack.c.l.b16 %v265
    %v643 = vunpack.c.h.b16 %v265
    %v644 = vunpack.c.l.b16 %v266
    %v645 = vunpack.c.h.b16 %v266
    %v646 = vunpack.c.l.b16 %v267
    %v647 = vunpack.c.h.b16 %v267
    %v648 = vunpack.c.l.b16 %v268
    %v649 = vunpack.c.h.b16 %v268
    %v650 = vunpack.c.l.b16 %v269
    %v651 = vunpack.c.h.b16 %v269
    %v652 = vunpack.c.l.b16 %v270
    %v653 = vunpack.c.h.b16 %v270
    %v654 = vunpack.c.l.b16 %v271
    %v655 = vunpack.c.h.b16 %v271
    %v656 = vunpack.c.l.b16 %v272
    %v657 = vunpack.c.h.b16 %v272
    %v658 = vunpack.c.l.b16 %v273
    %v659 = vunpack.c.h.b16 %v273
    %v660 = vunpack.c.l.b16 %v274
    %v661 = vunpack.c.h.b16 %v274
    %v662 = vunpack.c.l.b16 %v275
    %v663 = vunpack.c.h.b16 %v275
    %v664 = vunpack.c.l.b16 %v276
    %v665 = vunpack.c.h.b16 %v276
    %v666 = vunpack.c.l.b16 %v277
    %v667 = vunpack.c.h.b16 %v277
    %v668 = vunpack.c.l.b16 %v278
    %v669 = vunpack.c.h.b16 %v278
    %v670 = vunpack.c.l.b16 %v279
    %v671 = vunpack.c.h.b16 %v279
    %v672 = vunpack.c.l.b16 %v280
    %v673 = vunpack.c.h.b16 %v280
    %v674 = vunpack.c.l.b16 %v281
    %v675 = vunpack.c.h.b16 %v281
    %v676 = vunpack.c.l.b16 %v282
    %v677 = vunpack.c.h.b16 %v282
    %v678 = vunpack.c.l.b16 %v283
    %v679 = vunpack.c.h.b16 %v283
    %v680 = vunpack.c.l.b16 %v284
    %v681 = vunpack.c.h.b16 %v284
    %v682 = vunpack.c.l.b16 %v285
    %v683 = vunpack.c.h.b16 %v285
    %v684 = vpack.c.b16 %v518, %v516
    %v685 = vpack.c.b16 %v519, %v517
    %v686 = vpack.c.b16 %v522, %v520
    %v687 = vpack.c.b16 %v523, %v521
    %v688 = vpack.c.b16 %v526, %v524
    %v689 = vpack.c.b16 %v527, %v525
    %v690 = vpack.c.b16 %v530, %v528
    %v691 = vpack.c.b16 %v531, %v529
    %v692 = vpack.c.b16 %v534, %v532
    %v693 = vpack.c.b16 %v535, %v533
    %v694 = vpack.c.b16 %v538, %v536
    %v695 = vpack.c.b16 %v539, %v537
    %v696 = vpack.c.b16 %v542, %v540
    %v697 = vpack.c.b16 %v543, %v541
    %v698 = vpack.c.b16 %v546, %v544
    %v699 = vpack.c.b16 %v547, %v545
    %v700 = vpack.c.b16 %v550, %v548
    %v701 = vpack.c.b16 %v551, %v549
    %v702 = vpack.c.b16 %v554, %v552
    %v703 = vpack.c.b16 %v555, %v553
    %v704 = vpack.c.b16 %v558, %v556
    %v705 = vpack.c.b16 %v559, %v557
    %v706 = vpack.c.b16 %v562, %v560
    %v707 = vpack.c.b16 %v563, %v561
    %v708 = vpack.c.b16 %v566, %v564
    %v709 = vpack.c.b16 %v567, %v565
    %v710 = vpack.c.b16 %v570, %v568
    %v711 = vpack.c.b16 %v571, %v569
    %v712 = vpack.c.b16 %v574, %v572
    %v713 = vpack.c.b16 %v575, %v573
    %v714 = vpack.c.b16 %v578, %v576
    %v715 = vpack.c.b16 %v579, %v577
    %v716 = vpack.c.b16 %v582, %v580
    %v717 = vpack.c.b16 %v583, %v581
    %v718 = vpack.c.b16 %v586, %v584
    %v719 = vpack.c.b16 %v587, %v585
    %v720 = vpack.c.b16 %v590, %v588
    %v721 = vpack.c.b16 %v591, %v589
    %v722 = vpack.c.b16 %v594, %v592
    %v723 = vpack.c.b16 %v595, %v593
    %v724 = vpack.c.b16 %v598, %v596
    %v725 = vpack.c.b16 %v599, %v597
    %v726 = vpack.c.b16 %v602, %v600
    %v727 = vpack.c.b16 %v603, %v601
    %v728 = vpack.c.b16 %v606, %v604
    %v729 = vpack.c.b16 %v607, %v605
    %v730 = vpack.c.b16 %v610, %v608
    %v731 = vpack.c.b16 %v611, %v609
    %v732 = vpack.c.b16 %v614, %v612
    %v733 = vpack.c.b16 %v615, %v613
    %v734 = vpack.c.b16 %v618, %v616
    %v735 = vpack.c.b16 %v619, %v617
    %v736 = vpack.c.b16 %v622, %v620
    %v737 = vpack.c.b16 %v623, %v621
    %v738 = vpack.c.b16 %v626, %v624
    %v739 = vpack.c.b16 %v627, %v625
    %v740 = vpack.c.b16 %v630, %v628
    %v741 = vpack.c.b16 %v631, %v629
    %v742 = vpack.c.b16 %v634, %v632
    %v743 = vpack.c.b16 %v635, %v633
    %v744 = vpack.c.b16 %v638, %v636
    %v745 = vpack.c.b16 %v639, %v637
    %v746 = vpack.c.b16 %v642, %v640
    %v747 = vpack.c.b16 %v643, %v641
    %v748 = vpack.c.b16 %v646, %v644
    %v749 = vpack.c.b16 %v647, %v645
    %v750 = vpack.c.b16 %v650, %v648
    %v751 = vpack.c.b16 %v651, %v649
    %v752 = vpack.c.b16 %v654, %v652
    %v753 = vpack.c.b16 %v655, %v653
    %v754 = vpack.c.b16 %v658, %v656
    %v755 = vpack.c.b16 %v659, %v657
    %v756 = vpack.c.b16 %v662, %v660
    %v757 = vpack.c.b16 %v663, %v661
    %v758 = vpack.c.b16 %v666, %v664
    %v759 = vpack.c.b16 %v667, %v665
    %v760 = vpack.c.b16 %v670, %v668
    %v761 = vpack.c.b16 %v671, %v669
    %v762 = vpack.c.b16 %v674, %v672
    %v763 = vpack.c.b16 %v675, %v673
    %v764 = vpack.c.b16 %v678, %v676
    %v765 = vpack.c.b16 %v679, %v677
    %v766 = vpack.c.b16 %v682, %v680
    %v767 = vpack.c.b16 %v683, %v681
    %vm852 = vcmask 261120
    %v854 = vsel %vm852, %v421, 0
    %856 = vmatprep.subr.bf16.mxu0 %v685
    %857 = vmatpush1.bf16.msra.mxu0 %v684
    %858 = vmatprep.subr.bf16.mxu0 %v687
    %859 = vmatpush1.bf16.msra.mxu0 %v686
    %860 = vmatprep.subr.bf16.mxu0 %v689
    %861 = vmatpush1.bf16.msra.mxu0 %v688
    %862 = vmatprep.subr.bf16.mxu0 %v691
    %863 = vmatpush1.bf16.msra.mxu0 %v690
    %864 = vmatprep.subr.bf16.mxu0 %v693
    %865 = vmatpush1.bf16.msra.mxu0 %v692
    %866 = vmatprep.subr.bf16.mxu0 %v695
    %867 = vmatpush1.bf16.msra.mxu0 %v694
    %868 = vmatprep.subr.bf16.mxu0 %v697
    %869 = vmatpush1.bf16.msra.mxu0 %v696
    %870 = vmatprep.subr.bf16.mxu0 %v699
    %871 = vmatpush1.bf16.msra.mxu0 %v698
    %872 = vmatprep.subr.bf16.mxu0 %v701
    %873 = vmatpush1.bf16.msra.mxu0 %v700
    %874 = vmatprep.subr.bf16.mxu0 %v703
    %875 = vmatpush1.bf16.msra.mxu0 %v702
    %876 = vmatprep.subr.bf16.mxu0 %v705
    %877 = vmatpush1.bf16.msra.mxu0 %v704
    %878 = vmatprep.subr.bf16.mxu0 %v707
    %879 = vmatpush1.bf16.msra.mxu0 %v706
    %880 = vmatprep.subr.bf16.mxu0 %v709
    %881 = vmatpush1.bf16.msra.mxu0 %v708
    %882 = vmatprep.subr.bf16.mxu0 %v711
    %883 = vmatpush1.bf16.msra.mxu0 %v710
    %884 = vmatprep.subr.bf16.mxu0 %v713
    %885 = vmatpush1.bf16.msra.mxu0 %v712
    %886 = vmatprep.subr.bf16.mxu0 %v715
    %887 = vmatpush1.bf16.msra.mxu0 %v714
    %888 = vmatprep.mubr.bf16.mxu0 %v417
    %889 = vmatmul.mubr.bf16.gmra.mrb[0].mxu0 %v416
    %v890 = vpop.f32.mrb[0].mxu0
    %v891 = vadd.f32 %v427, %v890
    %v892 = vpop.f32.mrb[0].mxu0
    %v893 = vadd.f32 %v431, %v892
    %v894 = vpop.f32.mrb[0].mxu0
    %v895 = vpop.f32.mrb[0].mxu0
    %896 = vdwg.mxu0
    %897 = vmatprep.subr.bf16.mxu0 %v717
    %898 = vmatpush1.bf16.msra.mxu0 %v716
    %899 = vmatprep.subr.bf16.mxu0 %v719
    %900 = vmatpush1.bf16.msra.mxu0 %v718
    %901 = vmatprep.subr.bf16.mxu0 %v721
    %902 = vmatpush1.bf16.msra.mxu0 %v720
    %903 = vmatprep.subr.bf16.mxu0 %v723
    %904 = vmatpush1.bf16.msra.mxu0 %v722
    %905 = vmatprep.subr.bf16.mxu0 %v725
    %906 = vmatpush1.bf16.msra.mxu0 %v724
    %907 = vmatprep.subr.bf16.mxu0 %v727
    %908 = vmatpush1.bf16.msra.mxu0 %v726
    %909 = vmatprep.subr.bf16.mxu0 %v729
    %910 = vmatpush1.bf16.msra.mxu0 %v728
    %911 = vmatprep.subr.bf16.mxu0 %v731
    %912 = vmatpush1.bf16.msra.mxu0 %v730
    %913 = vmatprep.subr.bf16.mxu0 %v733
    %914 = vmatpush1.bf16.msra.mxu0 %v732
    %915 = vmatprep.subr.bf16.mxu0 %v735
    %916 = vmatpush1.bf16.msra.mxu0 %v734
    %917 = vmatprep.subr.bf16.mxu0 %v737
    %918 = vmatpush1.bf16.msra.mxu0 %v736
    %919 = vmatprep.subr.bf16.mxu0 %v739
    %920 = vmatpush1.bf16.msra.mxu0 %v738
    %921 = vmatprep.subr.bf16.mxu0 %v741
    %922 = vmatpush1.bf16.msra.mxu0 %v740
    %923 = vmatprep.subr.bf16.mxu0 %v743
    %924 = vmatpush1.bf16.msra.mxu0 %v742
    %925 = vmatprep.subr.bf16.mxu0 %v745
    %926 = vmatpush1.bf16.msra.mxu0 %v744
    %927 = vmatprep.subr.bf16.mxu0 %v747
    %928 = vmatpush1.bf16.msra.mxu0 %v746
    %929 = vmatprep.mubr.bf16.mxu0 %v419
    %930 = vmatmul.mubr.bf16.gmra.mrb[0].mxu0 %v418
    %v931 = vpop.f32.mrb[0].mxu0
    %v932 = vadd.f32 %v891, %v931
    %v933 = vpop.f32.mrb[0].mxu0
    %v934 = vadd.f32 %v893, %v933
    %v935 = vpop.f32.mrb[0].mxu0
    %v936 = vpop.f32.mrb[0].mxu0
    %937 = vdwg.mxu0
    %938 = vmatprep.subr.bf16.mxu0 %v749
    %939 = vmatpush1.bf16.msra.mxu0 %v748
    %940 = vmatprep.subr.bf16.mxu0 %v751
    %941 = vmatpush1.bf16.msra.mxu0 %v750
    %942 = vmatprep.subr.bf16.mxu0 %v753
    %943 = vmatpush1.bf16.msra.mxu0 %v752
    %944 = vmatprep.subr.bf16.mxu0 %v755
    %945 = vmatpush1.bf16.msra.mxu0 %v754
    %946 = vmatprep.subr.bf16.mxu0 %v757
    %947 = vmatpush1.bf16.msra.mxu0 %v756
    %948 = vmatprep.subr.bf16.mxu0 %v759
    %949 = vmatpush1.bf16.msra.mxu0 %v758
    %950 = vmatprep.subr.bf16.mxu0 %v761
    %951 = vmatpush1.bf16.msra.mxu0 %v760
    %952 = vmatprep.subr.bf16.mxu0 %v763
    %953 = vmatpush1.bf16.msra.mxu0 %v762
    %954 = vmatprep.subr.bf16.mxu0 %v765
    %955 = vmatpush1.bf16.msra.mxu0 %v764
    %956 = vmatprep.subr.bf16.mxu0 %v767
    %957 = vmatpush1.bf16.msra.mxu0 %v766
    %958 = vmatprep.subr.bf16.mxu0 0
    %959 = vmatpush1.bf16.msra.mxu0 0
    %960 = vmatprep.subr.bf16.mxu0 0
    %961 = vmatpush1.bf16.msra.mxu0 0
    %962 = vmatprep.subr.bf16.mxu0 0
    %963 = vmatpush1.bf16.msra.mxu0 0
    %964 = vmatprep.subr.bf16.mxu0 0
    %965 = vmatpush1.bf16.msra.mxu0 0
    %966 = vmatprep.subr.bf16.mxu0 0
    %967 = vmatpush1.bf16.msra.mxu0 0
    %968 = vmatprep.subr.bf16.mxu0 0
    %969 = vmatpush1.bf16.msra.mxu0 0
    %970 = vmatprep.mubr.bf16.mxu0 %v854
    %971 = vmatmul.mubr.bf16.gmra.mrb[0].mxu0 %v420
    %v972 = vpop.f32.mrb[0].mxu0
    %v973 = vadd.f32 %v932, %v972
    %v974 = vpop.f32.mrb[0].mxu0
    %v975 = vadd.f32 %v934, %v974
    %v976 = vpop.f32.mrb[0].mxu0
    %v977 = vpop.f32.mrb[0].mxu0
    %978 = vdwg.mxu0
    %v979 = vmax.f32 %v973, 0.0
    %v980 = vmax.f32 %v975, 0.0
    %v981 = vld [vmem:[%s1 + $0x480] sm:$0xff]
    %v982 = vld [vmem:[%s1 + $0x488] sm:$0xf]
    %v983 = vld [vmem:[%s1 + $0x48c] sm:$0xff]
    %v984 = vld [vmem:[%s1 + $0x494] sm:$0xf]
    %v985 = vld [vmem:[%s1 + $0x498] sm:$0xff]
    %v986 = vld [vmem:[%s1 + $0x4a0] sm:$0xf]
    %v987 = vld [vmem:[%s1 + $0x4a4] sm:$0xff]
    %v988 = vld [vmem:[%s1 + $0x4ac] sm:$0xf]
    %v989 = vld [vmem:[%s1 + $0x4b0] sm:$0xff]
    %v990 = vld [vmem:[%s1 + $0x4b8] sm:$0xf]
    %v991 = vld [vmem:[%s1 + $0x4bc] sm:$0xff]
    %v992 = vld [vmem:[%s1 + $0x4c4] sm:$0xf]
    %v993 = vld [vmem:[%s1 + $0x4c8] sm:$0xff]
    %v994 = vld [vmem:[%s1 + $0x4d0] sm:$0xf]
    %v995 = vld [vmem:[%s1 + $0x4d4] sm:$0xff]
    %v996 = vld [vmem:[%s1 + $0x4dc] sm:$0xf]
    %v997 = vld [vmem:[%s1 + $0x4e0] sm:$0xff]
    %v998 = vld [vmem:[%s1 + $0x4e8] sm:$0xf]
    %v999 = vld [vmem:[%s1 + $0x4ec] sm:$0xff]
    %v1000 = vld [vmem:[%s1 + $0x4f4] sm:$0xf]
    %v1001 = vld [vmem:[%s1 + $0x4f8] sm:$0xff]
    %v1002 = vld [vmem:[%s1 + $0x500] sm:$0xf]
    %v1003 = vld [vmem:[%s1 + $0x504] sm:$0xff]
    %v1004 = vld [vmem:[%s1 + $0x50c] sm:$0xf]
    %v1005 = vld [vmem:[%s1 + $0x510] sm:$0xff]
    %v1006 = vld [vmem:[%s1 + $0x518] sm:$0xf]
    %v1007 = vld [vmem:[%s1 + $0x51c] sm:$0xff]
    %v1008 = vld [vmem:[%s1 + $0x524] sm:$0xf]
    %v1009 = vld [vmem:[%s1 + $0x528] sm:$0xff]
    %v1010 = vld [vmem:[%s1 + $0x530] sm:$0xf]
    %v1011 = vld [vmem:[%s1 + $0x534] sm:$0xff]
    %v1012 = vld [vmem:[%s1 + $0x53c] sm:$0xf]
    %v1013 = vld [vmem:[%s1 + $0x540] sm:$0xff]
    %v1014 = vld [vmem:[%s1 + $0x548] sm:$0xf]
    %v1015 = vld [vmem:[%s1 + $0x54c] sm:$0xff]
    %v1016 = vld [vmem:[%s1 + $0x554] sm:$0xf]
    %v1017 = vld [vmem:[%s1 + $0x558] sm:$0xff]
    %v1018 = vld [vmem:[%s1 + $0x560] sm:$0xf]
    %v1019 = vld [vmem:[%s1 + $0x564] sm:$0xff]
    %v1020 = vld [vmem:[%s1 + $0x56c] sm:$0xf]
    %v1021 = vld [vmem:[%s1 + $0x570] sm:$0xff]
    %v1022 = vld [vmem:[%s1 + $0x578] sm:$0xf]
    %v1023 = vld [vmem:[%s1 + $0x57c] sm:$0xff]
    %v1024 = vld [vmem:[%s1 + $0x584] sm:$0xf]
    %v1025 = vld [vmem:[%s1 + $0x588] sm:$0xff]
    %v1026 = vld [vmem:[%s1 + $0x590] sm:$0xf]
    %v1027 = vld [vmem:[%s1 + $0x594] sm:$0xff]
    %v1028 = vld [vmem:[%s1 + $0x59c] sm:$0xf]
    %v1029 = vld [vmem:[%s1 + $0x5a0] sm:$0xff]
    %v1030 = vld [vmem:[%s1 + $0x5a8] sm:$0xf]
    %v1031 = vld [vmem:[%s1 + $0x5ac] sm:$0xff]
    %v1032 = vld [vmem:[%s1 + $0x5b4] sm:$0xf]
    %v1033 = vld [vmem:[%s1 + $0x5b8] sm:$0xff]
    %v1034 = vld [vmem:[%s1 + $0x5c0] sm:$0xf]
    %v1035 = vld [vmem:[%s1 + $0x5c4] sm:$0xff]
    %v1036 = vld [vmem:[%s1 + $0x5cc] sm:$0xf]
    %v1037 = vld [vmem:[%s1 + $0x5d0] sm:$0xff]
    %v1038 = vld [vmem:[%s1 + $0x5d8] sm:$0xf]
    %v1039 = vld [vmem:[%s1 + $0x5dc] sm:$0xff]
    %v1040 = vld [vmem:[%s1 + $0x5e4] sm:$0xf]
    %v1041 = vld [vmem:[%s1 + $0x5e8] sm:$0xff]
    %v1042 = vld [vmem:[%s1 + $0x5f0] sm:$0xf]
    %v1043 = vld [vmem:[%s1 + $0x5f4] sm:$0xff]
    %v1044 = vld [vmem:[%s1 + $0x5fc] sm:$0xf]
    %v1045 = vld [vmem:[%s1 + $0x600] sm:$0xff]
    %v1046 = vld [vmem:[%s1 + $0x608] sm:$0xf]
    %v1047 = vld [vmem:[%s1 + $0x60c] sm:$0xff]
    %v1048 = vld [vmem:[%s1 + $0x614] sm:$0xf]
    %v1049 = vld [vmem:[%s1 + $0x618] sm:$0xff]
    %v1050 = vld [vmem:[%s1 + $0x620] sm:$0xf]
    %v1051 = vld [vmem:[%s1 + $0x624] sm:$0xff]
    %v1052 = vld [vmem:[%s1 + $0x62c] sm:$0xf]
    %v1053 = vld [vmem:[%s1 + $0x630] sm:$0xff]
    %v1054 = vld [vmem:[%s1 + $0x638] sm:$0xf]
    %v1055 = vld [vmem:[%s1 + $0x63c] sm:$0xff]
    %v1056 = vld [vmem:[%s1 + $0x644] sm:$0xf]
    %v1057 = vld [vmem:[%s1 + $0x648] sm:$0xff]
    %v1058 = vld [vmem:[%s1 + $0x650] sm:$0xf]
    %v1059 = vld [vmem:[%s1 + $0x654] sm:$0xff]
    %v1060 = vld [vmem:[%s1 + $0x65c] sm:$0xf]
    %v1061 = vld [vmem:[%s1 + $0x660] sm:$0xff]
    %v1062 = vld [vmem:[%s1 + $0x668] sm:$0xf]
    %v1063 = vld [vmem:[%s1 + $0x66c] sm:$0xff]
    %v1064 = vld [vmem:[%s1 + $0x674] sm:$0xf]
    %v1065 = vld [vmem:[%s1 + $0x678] sm:$0xff]
    %v1066 = vld [vmem:[%s1 + $0x680] sm:$0xf]
    %v1067 = vld [vmem:[%s1 + $0x684] sm:$0xff]
    %v1068 = vld [vmem:[%s1 + $0x68c] sm:$0xf]
    %v1069 = vld [vmem:[%s1 + $0x690] sm:$0xff]
    %v1070 = vld [vmem:[%s1 + $0x698] sm:$0xf]
    %v1071 = vld [vmem:[%s1 + $0x69c] sm:$0xff]
    %v1072 = vld [vmem:[%s1 + $0x6a4] sm:$0xf]
    %v1073 = vld [vmem:[%s1 + $0x6a8] sm:$0xff]
    %v1074 = vld [vmem:[%s1 + $0x6b0] sm:$0xf]
    %v1075 = vld [vmem:[%s1 + $0x6b4] sm:$0xff]
    %v1076 = vld [vmem:[%s1 + $0x6bc] sm:$0xf]
    %v1077 = vld [vmem:[%s1 + $0x6c0] sm:$0xff]
    %v1078 = vld [vmem:[%s1 + $0x6c8] sm:$0xf]
    %v1079 = vld [vmem:[%s1 + $0x6cc] sm:$0xff]
    %v1080 = vld [vmem:[%s1 + $0x6d4] sm:$0xf]
    %v1081 = vld [vmem:[%s1 + $0x6d8] sm:$0xff]
    %v1082 = vld [vmem:[%s1 + $0x6e0] sm:$0xf]
    %v1083 = vld [vmem:[%s1 + $0x6e4] sm:$0xff]
    %v1084 = vld [vmem:[%s1 + $0x6ec] sm:$0xf]
    %v1085 = vld [vmem:[%s1 + $0x6f0] sm:$0xff]
    %v1086 = vld [vmem:[%s1 + $0x6f8] sm:$0xf]
    %v1087 = vld [vmem:[%s1 + $0x6fc] sm:$0xff]
    %v1088 = vld [vmem:[%s1 + $0x704] sm:$0xf]
    %v1089 = vld [vmem:[%s1 + $0x708] sm:$0xff]
    %v1090 = vld [vmem:[%s1 + $0x710] sm:$0xf]
    %v1091 = vld [vmem:[%s1 + $0x714] sm:$0xff]
    %v1092 = vld [vmem:[%s1 + $0x71c] sm:$0xf]
    %v1093 = vld [vmem:[%s1 + $0x720] sm:$0xff]
    %v1094 = vld [vmem:[%s1 + $0x728] sm:$0xf]
    %v1095 = vld [vmem:[%s1 + $0x72c] sm:$0xff]
    %v1096 = vld [vmem:[%s1 + $0x734] sm:$0xf]
    %v1097 = vld [vmem:[%s1 + $0x738] sm:$0xff]
    %v1098 = vld [vmem:[%s1 + $0x740] sm:$0xf]
    %v1099 = vld [vmem:[%s1 + $0x744] sm:$0xff]
    %v1100 = vld [vmem:[%s1 + $0x74c] sm:$0xf]
    %v1101 = vld [vmem:[%s1 + $0x750] sm:$0xff]
    %v1102 = vld [vmem:[%s1 + $0x758] sm:$0xf]
    %v1103 = vld [vmem:[%s1 + $0x75c] sm:$0xff]
    %v1104 = vld [vmem:[%s1 + $0x764] sm:$0xf]
    %v1105 = vld [vmem:[%s1 + $0x768] sm:$0xff]
    %v1106 = vld [vmem:[%s1 + $0x770] sm:$0xf]
    %v1107 = vld [vmem:[%s1 + $0x774] sm:$0xff]
    %v1108 = vld [vmem:[%s1 + $0x77c] sm:$0xf]
    %v1109 = vld [vmem:[%s1 + $0x780] sm:$0xff]
    %v1110 = vld [vmem:[%s1 + $0x788] sm:$0xf]
    %v1111 = vld [vmem:[%s1 + $0x78c] sm:$0xff]
    %v1112 = vld [vmem:[%s1 + $0x794] sm:$0xf]
    %v1113 = vld [vmem:[%s1 + $0x798] sm:$0xff]
    %v1114 = vld [vmem:[%s1 + $0x7a0] sm:$0xf]
    %v1115 = vld [vmem:[%s1 + $0x7a4] sm:$0xff]
    %v1116 = vld [vmem:[%s1 + $0x7ac] sm:$0xf]
    %v1117 = vld [vmem:[%s1 + $0x7b0] sm:$0xff]
    %v1118 = vld [vmem:[%s1 + $0x7b8] sm:$0xf]
    %v1119 = vld [vmem:[%s1 + $0x7bc] sm:$0xff]
    %v1120 = vld [vmem:[%s1 + $0x7c4] sm:$0xf]
    %v1121 = vld [vmem:[%s1 + $0x7c8] sm:$0xff]
    %v1122 = vld [vmem:[%s1 + $0x7d0] sm:$0xf]
    %v1123 = vld [vmem:[%s1 + $0x7d4] sm:$0xff]
    %v1124 = vld [vmem:[%s1 + $0x7dc] sm:$0xf]
    %v1125 = vld [vmem:[%s1 + $0x7e0] sm:$0xff]
    %v1126 = vld [vmem:[%s1 + $0x7e8] sm:$0xf]
    %v1127 = vld [vmem:[%s1 + $0x7ec] sm:$0xff]
    %v1128 = vld [vmem:[%s1 + $0x7f4] sm:$0xf]
    %v1129 = vld [vmem:[%s1 + $0x7f8] sm:$0xff]
    %v1130 = vld [vmem:[%s1 + $0x800] sm:$0xf]
    %v1131 = vld [vmem:[%s1 + $0x804] sm:$0xff]
    %v1132 = vld [vmem:[%s1 + $0x80c] sm:$0xf]
    %v1133 = vld [vmem:[%s1 + $0x810] sm:$0xff]
    %v1134 = vld [vmem:[%s1 + $0x818] sm:$0xf]
    %v1135 = vld [vmem:[%s1 + $0x81c] sm:$0xff]
    %v1136 = vld [vmem:[%s1 + $0x824] sm:$0xf]
    %v1137 = vld [vmem:[%s1 + $0x828] sm:$0xff]
    %v1138 = vld [vmem:[%s1 + $0x830] sm:$0xf]
    %v1139 = vld [vmem:[%s1 + $0x834] sm:$0xff]
    %v1140 = vld [vmem:[%s1 + $0x83c] sm:$0xf]
    %v1141 = vld [vmem:[%s1 + $0x840] sm:$0xff]
    %v1142 = vld [vmem:[%s1 + $0x848] sm:$0xf]
    %v1143 = vld [vmem:[%s1 + $0x84c] sm:$0xff]
    %v1144 = vld [vmem:[%s1 + $0x854] sm:$0xf]
    %v1145 = vld [vmem:[%s1 + $0x858] sm:$0xff]
    %v1146 = vld [vmem:[%s1 + $0x860] sm:$0xf]
    %v1147 = vld [vmem:[%s1 + $0x864] sm:$0xff]
    %v1148 = vld [vmem:[%s1 + $0x86c] sm:$0xf]
    %v1149 = vld [vmem:[%s1 + $0x870] sm:$0xff]
    %v1150 = vld [vmem:[%s1 + $0x878] sm:$0xf]
    %v1151 = vld [vmem:[%s1 + $0x87c] sm:$0xff]
    %v1152 = vld [vmem:[%s1 + $0x884] sm:$0xf]
    %v1153 = vld [vmem:[%s1 + $0x888] sm:$0xff]
    %v1154 = vld [vmem:[%s1 + $0x890] sm:$0xf]
    %v1155 = vld [vmem:[%s1 + $0x894] sm:$0xff]
    %v1156 = vld [vmem:[%s1 + $0x89c] sm:$0xf]
    %v1157 = vld [vmem:[%s1 + $0x8a0] sm:$0xff]
    %v1158 = vld [vmem:[%s1 + $0x8a8] sm:$0xf]
    %v1159 = vld [vmem:[%s1 + $0x8ac] sm:$0xff]
    %v1160 = vld [vmem:[%s1 + $0x8b4] sm:$0xf]
    %v1161 = vld [vmem:[%s1 + $0xde0] sm:$0x11]
    %v1162 = vld [vmem:[%s1 + $0xde8] sm:$0x1]
    %v1165 = vrot.slane %v979, 6
    %v1166 = vrot.slane %v980, 6
    %v1169 = vsel %vm148, 0.0, %v1165
    %v1170 = vsel %vm148, 0.0, %v1166
    %v1171 = vsel %vm45, %v1169, 0.0
    %v1172 = vsel %vm45, %v1170, 0.0
    %v1173 = vrot.slane %v979, 2
    %v1174 = vrot.slane %v980, 2
    %v1177 = vsel %vm148, 0.0, %v1173
    %v1178 = vsel %vm148, 0.0, %v1174
    %v1179 = vsel %vm45, %v1177, 0.0
    %v1180 = vsel %vm45, %v1178, 0.0
    %v1183 = vrot.slane %v1171, 1
    %v1184 = vrot.slane %v1172, 1
    %v1187 = vrot.slane %v1171, 2
    %v1188 = vrot.slane %v1172, 2
    %v1193 = vrot.slane %v1179, 5
    %v1194 = vrot.slane %v1180, 5
    %v1197 = vrot.slane %v1179, 6
    %v1198 = vrot.slane %v1180, 6
    %v1201 = vrot.slane %v1179, 7
    %v1202 = vrot.slane %v1180, 7
    %v1205 = vsel %vm30, %v1171, %v1183
    %v1206 = vsel %vm30, %v1172, %v1184
    %v1207 = vsel %vm148, %v1205, %v1187
    %v1208 = vsel %vm148, %v1206, %v1188
    %v1209 = vsel %vm35, %v1207, %v1193
    %v1210 = vsel %vm35, %v1208, %v1194
    %v1211 = vsel %vm297, %v1209, %v1197
    %v1212 = vsel %vm297, %v1210, %v1198
    %v1213 = vsel %vm348, %v1211, %v1201
    %v1214 = vsel %vm348, %v1212, %v1202
    %v1215 = vrot.slane %v1171, 3
    %v1216 = vrot.slane %v1172, 3
    %v1219 = vsel %vm30, %v1183, %v1187
    %v1220 = vsel %vm30, %v1184, %v1188
    %v1221 = vsel %vm148, %v1219, %v1215
    %v1222 = vsel %vm148, %v1220, %v1216
    %v1223 = vsel %vm35, %v1221, %v1197
    %v1224 = vsel %vm35, %v1222, %v1198
    %v1225 = vsel %vm297, %v1223, %v1201
    %v1226 = vsel %vm297, %v1224, %v1202
    %v1227 = vsel %vm348, %v1225, %v1179
    %v1228 = vsel %vm348, %v1226, %v1180
    %v1229 = vrot.slane %v1171, 4
    %v1230 = vrot.slane %v1172, 4
    %v1233 = vrot.slane %v1179, 1
    %v1234 = vrot.slane %v1180, 1
    %v1237 = vsel %vm30, %v1187, %v1215
    %v1238 = vsel %vm30, %v1188, %v1216
    %v1239 = vsel %vm148, %v1237, %v1229
    %v1240 = vsel %vm148, %v1238, %v1230
    %v1241 = vsel %vm35, %v1239, %v1201
    %v1242 = vsel %vm35, %v1240, %v1202
    %v1243 = vsel %vm297, %v1241, %v1179
    %v1244 = vsel %vm297, %v1242, %v1180
    %v1245 = vsel %vm348, %v1243, %v1233
    %v1246 = vsel %vm348, %v1244, %v1234
    %1249 = vrot.lane.b32.xlu0 %v1227, 112
    %v1250 = vpop.permute.xlu0 %1249
    %1251 = vrot.lane.b32.xlu0 %v1228, 112
    %v1252 = vpop.permute.xlu0 %1251
    %vm1253 = vcmask 916480
    %v1254 = vsel %vm1253, %v1250, %v1252
    %1260 = vrot.lane.b32.xlu0 %v1245, 96
    %v1261 = vpop.permute.xlu0 %1260
    %1262 = vrot.lane.b32.xlu0 %v1246, 96
    %v1263 = vpop.permute.xlu0 %1262
    %v1264 = vsel %vm398, %v1261, %v1263
    %v1268 = vsel %vm1253, %v1214, %v1250
    %v1269 = vsel %vm398, %v1252, %v1261
    %v1270 = vpack.c.bf16 %v1213, %v1213
    %v1271 = vpack.c.bf16 %v1268, %v1268
    %v1272 = vpack.c.bf16 %v1254, %v1254
    %v1273 = vpack.c.bf16 %v1269, %v1269
    %v1274 = vpack.c.bf16 %v1264, %v1264
    %v1275 = vpack.c.bf16 %v1263, %v1263
    %v1276 = vunpack.c.l.bf16 %v1161
    %v1277 = vunpack.c.h.bf16 %v1161
    %v1278 = vunpack.c.l.bf16 %v1162
    %v1279 = vlaneseq
    %v1280 = vshrl.u32 %v1279, 7
    %v1281 = vsub.s32 0, %v1280
    %v1282 = vrot.slane %v1276, %v1281
    %v1283 = vlaneseq
    %v1284 = vshrl.u32 %v1283, 7
    %v1285 = vsub.s32 0, %v1284
    %v1286 = vrot.slane %v1277, %v1285
    %v1287 = vlaneseq
    %v1288 = vshrl.u32 %v1287, 7
    %v1289 = vsub.s32 0, %v1288
    %v1290 = vrot.slane %v1278, %v1289
    %v1471 = vunpack.c.l.b16 %v981
    %v1472 = vunpack.c.h.b16 %v981
    %v1473 = vunpack.c.l.b16 %v982
    %v1474 = vunpack.c.l.b16 %v983
    %v1475 = vunpack.c.h.b16 %v983
    %v1476 = vunpack.c.l.b16 %v984
    %v1477 = vunpack.c.l.b16 %v985
    %v1478 = vunpack.c.h.b16 %v985
    %v1479 = vunpack.c.l.b16 %v986
    %v1480 = vunpack.c.l.b16 %v987
    %v1481 = vunpack.c.h.b16 %v987
    %v1482 = vunpack.c.l.b16 %v988
    %v1483 = vunpack.c.l.b16 %v989
    %v1484 = vunpack.c.h.b16 %v989
    %v1485 = vunpack.c.l.b16 %v990
    %v1486 = vunpack.c.l.b16 %v991
    %v1487 = vunpack.c.h.b16 %v991
    %v1488 = vunpack.c.l.b16 %v992
    %v1489 = vunpack.c.l.b16 %v993
    %v1490 = vunpack.c.h.b16 %v993
    %v1491 = vunpack.c.l.b16 %v994
    %v1492 = vunpack.c.l.b16 %v995
    %v1493 = vunpack.c.h.b16 %v995
    %v1494 = vunpack.c.l.b16 %v996
    %v1495 = vunpack.c.l.b16 %v997
    %v1496 = vunpack.c.h.b16 %v997
    %v1497 = vunpack.c.l.b16 %v998
    %v1498 = vunpack.c.l.b16 %v999
    %v1499 = vunpack.c.h.b16 %v999
    %v1500 = vunpack.c.l.b16 %v1000
    %v1501 = vunpack.c.l.b16 %v1001
    %v1502 = vunpack.c.h.b16 %v1001
    %v1503 = vunpack.c.l.b16 %v1002
    %v1504 = vunpack.c.l.b16 %v1003
    %v1505 = vunpack.c.h.b16 %v1003
    %v1506 = vunpack.c.l.b16 %v1004
    %v1507 = vunpack.c.l.b16 %v1005
    %v1508 = vunpack.c.h.b16 %v1005
    %v1509 = vunpack.c.l.b16 %v1006
    %v1510 = vunpack.c.l.b16 %v1007
    %v1511 = vunpack.c.h.b16 %v1007
    %v1512 = vunpack.c.l.b16 %v1008
    %v1513 = vunpack.c.l.b16 %v1009
    %v1514 = vunpack.c.h.b16 %v1009
    %v1515 = vunpack.c.l.b16 %v1010
    %v1516 = vunpack.c.l.b16 %v1011
    %v1517 = vunpack.c.h.b16 %v1011
    %v1518 = vunpack.c.l.b16 %v1012
    %v1519 = vunpack.c.l.b16 %v1013
    %v1520 = vunpack.c.h.b16 %v1013
    %v1521 = vunpack.c.l.b16 %v1014
    %v1522 = vunpack.c.l.b16 %v1015
    %v1523 = vunpack.c.h.b16 %v1015
    %v1524 = vunpack.c.l.b16 %v1016
    %v1525 = vunpack.c.l.b16 %v1017
    %v1526 = vunpack.c.h.b16 %v1017
    %v1527 = vunpack.c.l.b16 %v1018
    %v1528 = vunpack.c.l.b16 %v1019
    %v1529 = vunpack.c.h.b16 %v1019
    %v1530 = vunpack.c.l.b16 %v1020
    %v1531 = vunpack.c.l.b16 %v1021
    %v1532 = vunpack.c.h.b16 %v1021
    %v1533 = vunpack.c.l.b16 %v1022
    %v1534 = vunpack.c.l.b16 %v1023
    %v1535 = vunpack.c.h.b16 %v1023
    %v1536 = vunpack.c.l.b16 %v1024
    %v1537 = vunpack.c.l.b16 %v1025
    %v1538 = vunpack.c.h.b16 %v1025
    %v1539 = vunpack.c.l.b16 %v1026
    %v1540 = vunpack.c.l.b16 %v1027
    %v1541 = vunpack.c.h.b16 %v1027
    %v1542 = vunpack.c.l.b16 %v1028
    %v1543 = vunpack.c.l.b16 %v1029
    %v1544 = vunpack.c.h.b16 %v1029
    %v1545 = vunpack.c.l.b16 %v1030
    %v1546 = vunpack.c.l.b16 %v1031
    %v1547 = vunpack.c.h.b16 %v1031
    %v1548 = vunpack.c.l.b16 %v1032
    %v1549 = vunpack.c.l.b16 %v1033
    %v1550 = vunpack.c.h.b16 %v1033
    %v1551 = vunpack.c.l.b16 %v1034
    %v1552 = vunpack.c.l.b16 %v1035
    %v1553 = vunpack.c.h.b16 %v1035
    %v1554 = vunpack.c.l.b16 %v1036
    %v1555 = vunpack.c.l.b16 %v1037
    %v1556 = vunpack.c.h.b16 %v1037
    %v1557 = vunpack.c.l.b16 %v1038
    %v1558 = vunpack.c.l.b16 %v1039
    %v1559 = vunpack.c.h.b16 %v1039
    %v1560 = vunpack.c.l.b16 %v1040
    %v1561 = vunpack.c.l.b16 %v1041
    %v1562 = vunpack.c.h.b16 %v1041
    %v1563 = vunpack.c.l.b16 %v1042
    %v1564 = vunpack.c.l.b16 %v1043
    %v1565 = vunpack.c.h.b16 %v1043
    %v1566 = vunpack.c.l.b16 %v1044
    %v1567 = vunpack.c.l.b16 %v1045
    %v1568 = vunpack.c.h.b16 %v1045
    %v1569 = vunpack.c.l.b16 %v1046
    %v1570 = vunpack.c.l.b16 %v1047
    %v1571 = vunpack.c.h.b16 %v1047
    %v1572 = vunpack.c.l.b16 %v1048
    %v1573 = vunpack.c.l.b16 %v1049
    %v1574 = vunpack.c.h.b16 %v1049
    %v1575 = vunpack.c.l.b16 %v1050
    %v1576 = vunpack.c.l.b16 %v1051
    %v1577 = vunpack.c.h.b16 %v1051
    %v1578 = vunpack.c.l.b16 %v1052
    %v1579 = vunpack.c.l.b16 %v1053
    %v1580 = vunpack.c.h.b16 %v1053
    %v1581 = vunpack.c.l.b16 %v1054
    %v1582 = vunpack.c.l.b16 %v1055
    %v1583 = vunpack.c.h.b16 %v1055
    %v1584 = vunpack.c.l.b16 %v1056
    %v1585 = vunpack.c.l.b16 %v1057
    %v1586 = vunpack.c.h.b16 %v1057
    %v1587 = vunpack.c.l.b16 %v1058
    %v1588 = vunpack.c.l.b16 %v1059
    %v1589 = vunpack.c.h.b16 %v1059
    %v1590 = vunpack.c.l.b16 %v1060
    %v1591 = vunpack.c.l.b16 %v1061
    %v1592 = vunpack.c.h.b16 %v1061
    %v1593 = vunpack.c.l.b16 %v1062
    %v1594 = vunpack.c.l.b16 %v1063
    %v1595 = vunpack.c.h.b16 %v1063
    %v1596 = vunpack.c.l.b16 %v1064
    %v1597 = vunpack.c.l.b16 %v1065
    %v1598 = vunpack.c.h.b16 %v1065
    %v1599 = vunpack.c.l.b16 %v1066
    %v1600 = vunpack.c.l.b16 %v1067
    %v1601 = vunpack.c.h.b16 %v1067
    %v1602 = vunpack.c.l.b16 %v1068
    %v1603 = vunpack.c.l.b16 %v1069
    %v1604 = vunpack.c.h.b16 %v1069
    %v1605 = vunpack.c.l.b16 %v1070
    %v1606 = vunpack.c.l.b16 %v1071
    %v1607 = vunpack.c.h.b16 %v1071
    %v1608 = vunpack.c.l.b16 %v1072
    %v1609 = vunpack.c.l.b16 %v1073
    %v1610 = vunpack.c.h.b16 %v1073
    %v1611 = vunpack.c.l.b16 %v1074
    %v1612 = vunpack.c.l.b16 %v1075
    %v1613 = vunpack.c.h.b16 %v1075
    %v1614 = vunpack.c.l.b16 %v1076
    %v1615 = vunpack.c.l.b16 %v1077
    %v1616 = vunpack.c.h.b16 %v1077
    %v1617 = vunpack.c.l.b16 %v1078
    %v1618 = vunpack.c.l.b16 %v1079
    %v1619 = vunpack.c.h.b16 %v1079
    %v1620 = vunpack.c.l.b16 %v1080
    %v1621 = vunpack.c.l.b16 %v1081
    %v1622 = vunpack.c.h.b16 %v1081
    %v1623 = vunpack.c.l.b16 %v1082
    %v1624 = vunpack.c.l.b16 %v1083
    %v1625 = vunpack.c.h.b16 %v1083
    %v1626 = vunpack.c.l.b16 %v1084
    %v1627 = vunpack.c.l.b16 %v1085
    %v1628 = vunpack.c.h.b16 %v1085
    %v1629 = vunpack.c.l.b16 %v1086
    %v1630 = vunpack.c.l.b16 %v1087
    %v1631 = vunpack.c.h.b16 %v1087
    %v1632 = vunpack.c.l.b16 %v1088
    %v1633 = vunpack.c.l.b16 %v1089
    %v1634 = vunpack.c.h.b16 %v1089
    %v1635 = vunpack.c.l.b16 %v1090
    %v1636 = vunpack.c.l.b16 %v1091
    %v1637 = vunpack.c.h.b16 %v1091
    %v1638 = vunpack.c.l.b16 %v1092
    %v1639 = vunpack.c.l.b16 %v1093
    %v1640 = vunpack.c.h.b16 %v1093
    %v1641 = vunpack.c.l.b16 %v1094
    %v1642 = vunpack.c.l.b16 %v1095
    %v1643 = vunpack.c.h.b16 %v1095
    %v1644 = vunpack.c.l.b16 %v1096
    %v1645 = vunpack.c.l.b16 %v1097
    %v1646 = vunpack.c.h.b16 %v1097
    %v1647 = vunpack.c.l.b16 %v1098
    %v1648 = vunpack.c.l.b16 %v1099
    %v1649 = vunpack.c.h.b16 %v1099
    %v1650 = vunpack.c.l.b16 %v1100
    %v1651 = vunpack.c.l.b16 %v1101
    %v1652 = vunpack.c.h.b16 %v1101
    %v1653 = vunpack.c.l.b16 %v1102
    %v1654 = vunpack.c.l.b16 %v1103
    %v1655 = vunpack.c.h.b16 %v1103
    %v1656 = vunpack.c.l.b16 %v1104
    %v1657 = vunpack.c.l.b16 %v1105
    %v1658 = vunpack.c.h.b16 %v1105
    %v1659 = vunpack.c.l.b16 %v1106
    %v1660 = vunpack.c.l.b16 %v1107
    %v1661 = vunpack.c.h.b16 %v1107
    %v1662 = vunpack.c.l.b16 %v1108
    %v1663 = vunpack.c.l.b16 %v1109
    %v1664 = vunpack.c.h.b16 %v1109
    %v1665 = vunpack.c.l.b16 %v1110
    %v1666 = vunpack.c.l.b16 %v1111
    %v1667 = vunpack.c.h.b16 %v1111
    %v1668 = vunpack.c.l.b16 %v1112
    %v1669 = vunpack.c.l.b16 %v1113
    %v1670 = vunpack.c.h.b16 %v1113
    %v1671 = vunpack.c.l.b16 %v1114
    %v1672 = vunpack.c.l.b16 %v1115
    %v1673 = vunpack.c.h.b16 %v1115
    %v1674 = vunpack.c.l.b16 %v1116
    %v1675 = vunpack.c.l.b16 %v1117
    %v1676 = vunpack.c.h.b16 %v1117
    %v1677 = vunpack.c.l.b16 %v1118
    %v1678 = vunpack.c.l.b16 %v1119
    %v1679 = vunpack.c.h.b16 %v1119
    %v1680 = vunpack.c.l.b16 %v1120
    %v1681 = vunpack.c.l.b16 %v1121
    %v1682 = vunpack.c.h.b16 %v1121
    %v1683 = vunpack.c.l.b16 %v1122
    %v1684 = vunpack.c.l.b16 %v1123
    %v1685 = vunpack.c.h.b16 %v1123
    %v1686 = vunpack.c.l.b16 %v1124
    %v1687 = vunpack.c.l.b16 %v1125
    %v1688 = vunpack.c.h.b16 %v1125
    %v1689 = vunpack.c.l.b16 %v1126
    %v1690 = vunpack.c.l.b16 %v1127
    %v1691 = vunpack.c.h.b16 %v1127
    %v1692 = vunpack.c.l.b16 %v1128
    %v1693 = vunpack.c.l.b16 %v1129
    %v1694 = vunpack.c.h.b16 %v1129
    %v1695 = vunpack.c.l.b16 %v1130
    %v1696 = vunpack.c.l.b16 %v1131
    %v1697 = vunpack.c.h.b16 %v1131
    %v1698 = vunpack.c.l.b16 %v1132
    %v1699 = vunpack.c.l.b16 %v1133
    %v1700 = vunpack.c.h.b16 %v1133
    %v1701 = vunpack.c.l.b16 %v1134
    %v1702 = vunpack.c.l.b16 %v1135
    %v1703 = vunpack.c.h.b16 %v1135
    %v1704 = vunpack.c.l.b16 %v1136
    %v1705 = vunpack.c.l.b16 %v1137
    %v1706 = vunpack.c.h.b16 %v1137
    %v1707 = vunpack.c.l.b16 %v1138
    %v1708 = vunpack.c.l.b16 %v1139
    %v1709 = vunpack.c.h.b16 %v1139
    %v1710 = vunpack.c.l.b16 %v1140
    %v1711 = vunpack.c.l.b16 %v1141
    %v1712 = vunpack.c.h.b16 %v1141
    %v1713 = vunpack.c.l.b16 %v1142
    %v1714 = vunpack.c.l.b16 %v1143
    %v1715 = vunpack.c.h.b16 %v1143
    %v1716 = vunpack.c.l.b16 %v1144
    %v1717 = vunpack.c.l.b16 %v1145
    %v1718 = vunpack.c.h.b16 %v1145
    %v1719 = vunpack.c.l.b16 %v1146
    %v1720 = vunpack.c.l.b16 %v1147
    %v1721 = vunpack.c.h.b16 %v1147
    %v1722 = vunpack.c.l.b16 %v1148
    %v1723 = vunpack.c.l.b16 %v1149
    %v1724 = vunpack.c.h.b16 %v1149
    %v1725 = vunpack.c.l.b16 %v1150
    %v1726 = vunpack.c.l.b16 %v1151
    %v1727 = vunpack.c.h.b16 %v1151
    %v1728 = vunpack.c.l.b16 %v1152
    %v1729 = vunpack.c.l.b16 %v1153
    %v1730 = vunpack.c.h.b16 %v1153
    %v1731 = vunpack.c.l.b16 %v1154
    %v1732 = vunpack.c.l.b16 %v1155
    %v1733 = vunpack.c.h.b16 %v1155
    %v1734 = vunpack.c.l.b16 %v1156
    %v1735 = vunpack.c.l.b16 %v1157
    %v1736 = vunpack.c.h.b16 %v1157
    %v1737 = vunpack.c.l.b16 %v1158
    %v1738 = vunpack.c.l.b16 %v1159
    %v1739 = vunpack.c.h.b16 %v1159
    %v1740 = vunpack.c.l.b16 %v1160
    %v1741 = vpack.c.b16 %v1474, %v1471
    %v1742 = vpack.c.b16 %v1475, %v1472
    %v1743 = vpack.c.b16 %v1476, %v1473
    %v1744 = vpack.c.b16 %v1480, %v1477
    %v1745 = vpack.c.b16 %v1481, %v1478
    %v1746 = vpack.c.b16 %v1482, %v1479
    %v1747 = vpack.c.b16 %v1486, %v1483
    %v1748 = vpack.c.b16 %v1487, %v1484
    %v1749 = vpack.c.b16 %v1488, %v1485
    %v1750 = vpack.c.b16 %v1492, %v1489
    %v1751 = vpack.c.b16 %v1493, %v1490
    %v1752 = vpack.c.b16 %v1494, %v1491
    %v1753 = vpack.c.b16 %v1498, %v1495
    %v1754 = vpack.c.b16 %v1499, %v1496
    %v1755 = vpack.c.b16 %v1500, %v1497
    %v1756 = vpack.c.b16 %v1504, %v1501
    %v1757 = vpack.c.b16 %v1505, %v1502
    %v1758 = vpack.c.b16 %v1506, %v1503
    %v1759 = vpack.c.b16 %v1510, %v1507
    %v1760 = vpack.c.b16 %v1511, %v1508
    %v1761 = vpack.c.b16 %v1512, %v1509
    %v1762 = vpack.c.b16 %v1516, %v1513
    %v1763 = vpack.c.b16 %v1517, %v1514
    %v1764 = vpack.c.b16 %v1518, %v1515
    %v1765 = vpack.c.b16 %v1522, %v1519
    %v1766 = vpack.c.b16 %v1523, %v1520
    %v1767 = vpack.c.b16 %v1524, %v1521
    %v1768 = vpack.c.b16 %v1528, %v1525
    %v1769 = vpack.c.b16 %v1529, %v1526
    %v1770 = vpack.c.b16 %v1530, %v1527
    %v1771 = vpack.c.b16 %v1534, %v1531
    %v1772 = vpack.c.b16 %v1535, %v1532
    %v1773 = vpack.c.b16 %v1536, %v1533
    %v1774 = vpack.c.b16 %v1540, %v1537
    %v1775 = vpack.c.b16 %v1541, %v1538
    %v1776 = vpack.c.b16 %v1542, %v1539
    %v1777 = vpack.c.b16 %v1546, %v1543
    %v1778 = vpack.c.b16 %v1547, %v1544
    %v1779 = vpack.c.b16 %v1548, %v1545
    %v1780 = vpack.c.b16 %v1552, %v1549
    %v1781 = vpack.c.b16 %v1553, %v1550
    %v1782 = vpack.c.b16 %v1554, %v1551
    %v1783 = vpack.c.b16 %v1558, %v1555
    %v1784 = vpack.c.b16 %v1559, %v1556
    %v1785 = vpack.c.b16 %v1560, %v1557
    %v1786 = vpack.c.b16 %v1564, %v1561
    %v1787 = vpack.c.b16 %v1565, %v1562
    %v1788 = vpack.c.b16 %v1566, %v1563
    %v1789 = vpack.c.b16 %v1570, %v1567
    %v1790 = vpack.c.b16 %v1571, %v1568
    %v1791 = vpack.c.b16 %v1572, %v1569
    %v1792 = vpack.c.b16 %v1576, %v1573
    %v1793 = vpack.c.b16 %v1577, %v1574
    %v1794 = vpack.c.b16 %v1578, %v1575
    %v1795 = vpack.c.b16 %v1582, %v1579
    %v1796 = vpack.c.b16 %v1583, %v1580
    %v1797 = vpack.c.b16 %v1584, %v1581
    %v1798 = vpack.c.b16 %v1588, %v1585
    %v1799 = vpack.c.b16 %v1589, %v1586
    %v1800 = vpack.c.b16 %v1590, %v1587
    %v1801 = vpack.c.b16 %v1594, %v1591
    %v1802 = vpack.c.b16 %v1595, %v1592
    %v1803 = vpack.c.b16 %v1596, %v1593
    %v1804 = vpack.c.b16 %v1600, %v1597
    %v1805 = vpack.c.b16 %v1601, %v1598
    %v1806 = vpack.c.b16 %v1602, %v1599
    %v1807 = vpack.c.b16 %v1606, %v1603
    %v1808 = vpack.c.b16 %v1607, %v1604
    %v1809 = vpack.c.b16 %v1608, %v1605
    %v1810 = vpack.c.b16 %v1612, %v1609
    %v1811 = vpack.c.b16 %v1613, %v1610
    %v1812 = vpack.c.b16 %v1614, %v1611
    %v1813 = vpack.c.b16 %v1618, %v1615
    %v1814 = vpack.c.b16 %v1619, %v1616
    %v1815 = vpack.c.b16 %v1620, %v1617
    %v1816 = vpack.c.b16 %v1624, %v1621
    %v1817 = vpack.c.b16 %v1625, %v1622
    %v1818 = vpack.c.b16 %v1626, %v1623
    %v1819 = vpack.c.b16 %v1630, %v1627
    %v1820 = vpack.c.b16 %v1631, %v1628
    %v1821 = vpack.c.b16 %v1632, %v1629
    %v1822 = vpack.c.b16 %v1636, %v1633
    %v1823 = vpack.c.b16 %v1637, %v1634
    %v1824 = vpack.c.b16 %v1638, %v1635
    %v1825 = vpack.c.b16 %v1642, %v1639
    %v1826 = vpack.c.b16 %v1643, %v1640
    %v1827 = vpack.c.b16 %v1644, %v1641
    %v1828 = vpack.c.b16 %v1648, %v1645
    %v1829 = vpack.c.b16 %v1649, %v1646
    %v1830 = vpack.c.b16 %v1650, %v1647
    %v1831 = vpack.c.b16 %v1654, %v1651
    %v1832 = vpack.c.b16 %v1655, %v1652
    %v1833 = vpack.c.b16 %v1656, %v1653
    %v1834 = vpack.c.b16 %v1660, %v1657
    %v1835 = vpack.c.b16 %v1661, %v1658
    %v1836 = vpack.c.b16 %v1662, %v1659
    %v1837 = vpack.c.b16 %v1666, %v1663
    %v1838 = vpack.c.b16 %v1667, %v1664
    %v1839 = vpack.c.b16 %v1668, %v1665
    %v1840 = vpack.c.b16 %v1672, %v1669
    %v1841 = vpack.c.b16 %v1673, %v1670
    %v1842 = vpack.c.b16 %v1674, %v1671
    %v1843 = vpack.c.b16 %v1678, %v1675
    %v1844 = vpack.c.b16 %v1679, %v1676
    %v1845 = vpack.c.b16 %v1680, %v1677
    %v1846 = vpack.c.b16 %v1684, %v1681
    %v1847 = vpack.c.b16 %v1685, %v1682
    %v1848 = vpack.c.b16 %v1686, %v1683
    %v1849 = vpack.c.b16 %v1690, %v1687
    %v1850 = vpack.c.b16 %v1691, %v1688
    %v1851 = vpack.c.b16 %v1692, %v1689
    %v1852 = vpack.c.b16 %v1696, %v1693
    %v1853 = vpack.c.b16 %v1697, %v1694
    %v1854 = vpack.c.b16 %v1698, %v1695
    %v1855 = vpack.c.b16 %v1702, %v1699
    %v1856 = vpack.c.b16 %v1703, %v1700
    %v1857 = vpack.c.b16 %v1704, %v1701
    %v1858 = vpack.c.b16 %v1708, %v1705
    %v1859 = vpack.c.b16 %v1709, %v1706
    %v1860 = vpack.c.b16 %v1710, %v1707
    %v1861 = vpack.c.b16 %v1714, %v1711
    %v1862 = vpack.c.b16 %v1715, %v1712
    %v1863 = vpack.c.b16 %v1716, %v1713
    %v1864 = vpack.c.b16 %v1720, %v1717
    %v1865 = vpack.c.b16 %v1721, %v1718
    %v1866 = vpack.c.b16 %v1722, %v1719
    %v1867 = vpack.c.b16 %v1726, %v1723
    %v1868 = vpack.c.b16 %v1727, %v1724
    %v1869 = vpack.c.b16 %v1728, %v1725
    %v1870 = vpack.c.b16 %v1732, %v1729
    %v1871 = vpack.c.b16 %v1733, %v1730
    %v1872 = vpack.c.b16 %v1734, %v1731
    %v1873 = vpack.c.b16 %v1738, %v1735
    %v1874 = vpack.c.b16 %v1739, %v1736
    %v1875 = vpack.c.b16 %v1740, %v1737
    %vm2011 = vcmask 654336
    %v2013 = vsel %vm2011, %v1275, 0
    %2015 = vmatprep.subr.bf16.mxu0 %v1742
    %2016 = vmatpush1.bf16.msra.mxu0 %v1741
    %2017 = vmatprep.subr.bf16.mxu0 %v1745
    %2018 = vmatpush1.bf16.msra.mxu0 %v1744
    %2019 = vmatprep.subr.bf16.mxu0 %v1748
    %2020 = vmatpush1.bf16.msra.mxu0 %v1747
    %2021 = vmatprep.subr.bf16.mxu0 %v1751
    %2022 = vmatpush1.bf16.msra.mxu0 %v1750
    %2023 = vmatprep.subr.bf16.mxu0 %v1754
    %2024 = vmatpush1.bf16.msra.mxu0 %v1753
    %2025 = vmatprep.subr.bf16.mxu0 %v1757
    %2026 = vmatpush1.bf16.msra.mxu0 %v1756
    %2027 = vmatprep.subr.bf16.mxu0 %v1760
    %2028 = vmatpush1.bf16.msra.mxu0 %v1759
    %2029 = vmatprep.subr.bf16.mxu0 %v1763
    %2030 = vmatpush1.bf16.msra.mxu0 %v1762
    %2031 = vmatprep.subr.bf16.mxu0 %v1766
    %2032 = vmatpush1.bf16.msra.mxu0 %v1765
    %2033 = vmatprep.subr.bf16.mxu0 %v1769
    %2034 = vmatpush1.bf16.msra.mxu0 %v1768
    %2035 = vmatprep.subr.bf16.mxu0 %v1772
    %2036 = vmatpush1.bf16.msra.mxu0 %v1771
    %2037 = vmatprep.subr.bf16.mxu0 %v1775
    %2038 = vmatpush1.bf16.msra.mxu0 %v1774
    %2039 = vmatprep.subr.bf16.mxu0 %v1778
    %2040 = vmatpush1.bf16.msra.mxu0 %v1777
    %2041 = vmatprep.subr.bf16.mxu0 %v1781
    %2042 = vmatpush1.bf16.msra.mxu0 %v1780
    %2043 = vmatprep.subr.bf16.mxu0 %v1784
    %2044 = vmatpush1.bf16.msra.mxu0 %v1783
    %2045 = vmatprep.subr.bf16.mxu0 %v1787
    %2046 = vmatpush1.bf16.msra.mxu0 %v1786
    %2047 = vmatprep.mubr.bf16.mxu0 %v1271
    %2048 = vmatmul.mubr.bf16.gmra.mrb[0].mxu0 %v1270
    %v2049 = vpop.f32.mrb[0].mxu0
    %v2050 = vadd.f32 %v1282, %v2049
    %v2051 = vpop.f32.mrb[0].mxu0
    %v2052 = vadd.f32 %v1286, %v2051
    %v2053 = vpop.f32.mrb[0].mxu0
    %v2054 = vpop.f32.mrb[0].mxu0
    %2055 = vdwg.mxu0
    %2056 = vmatprep.subr.bf16.mxu0 %v1790
    %2057 = vmatpush1.bf16.msra.mxu0 %v1789
    %2058 = vmatprep.subr.bf16.mxu0 %v1793
    %2059 = vmatpush1.bf16.msra.mxu0 %v1792
    %2060 = vmatprep.subr.bf16.mxu0 %v1796
    %2061 = vmatpush1.bf16.msra.mxu0 %v1795
    %2062 = vmatprep.subr.bf16.mxu0 %v1799
    %2063 = vmatpush1.bf16.msra.mxu0 %v1798
    %2064 = vmatprep.subr.bf16.mxu0 %v1802
    %2065 = vmatpush1.bf16.msra.mxu0 %v1801
    %2066 = vmatprep.subr.bf16.mxu0 %v1805
    %2067 = vmatpush1.bf16.msra.mxu0 %v1804
    %2068 = vmatprep.subr.bf16.mxu0 %v1808
    %2069 = vmatpush1.bf16.msra.mxu0 %v1807
    %2070 = vmatprep.subr.bf16.mxu0 %v1811
    %2071 = vmatpush1.bf16.msra.mxu0 %v1810
    %2072 = vmatprep.subr.bf16.mxu0 %v1814
    %2073 = vmatpush1.bf16.msra.mxu0 %v1813
    %2074 = vmatprep.subr.bf16.mxu0 %v1817
    %2075 = vmatpush1.bf16.msra.mxu0 %v1816
    %2076 = vmatprep.subr.bf16.mxu0 %v1820
    %2077 = vmatpush1.bf16.msra.mxu0 %v1819
    %2078 = vmatprep.subr.bf16.mxu0 %v1823
    %2079 = vmatpush1.bf16.msra.mxu0 %v1822
    %2080 = vmatprep.subr.bf16.mxu0 %v1826
    %2081 = vmatpush1.bf16.msra.mxu0 %v1825
    %2082 = vmatprep.subr.bf16.mxu0 %v1829
    %2083 = vmatpush1.bf16.msra.mxu0 %v1828
    %2084 = vmatprep.subr.bf16.mxu0 %v1832
    %2085 = vmatpush1.bf16.msra.mxu0 %v1831
    %2086 = vmatprep.subr.bf16.mxu0 %v1835
    %2087 = vmatpush1.bf16.msra.mxu0 %v1834
    %2088 = vmatprep.mubr.bf16.mxu0 %v1273
    %2089 = vmatmul.mubr.bf16.gmra.mrb[0].mxu0 %v1272
    %v2090 = vpop.f32.mrb[0].mxu0
    %v2091 = vadd.f32 %v2050, %v2090
    %v2092 = vpop.f32.mrb[0].mxu0
    %v2093 = vadd.f32 %v2052, %v2092
    %v2094 = vpop.f32.mrb[0].mxu0
    %v2095 = vpop.f32.mrb[0].mxu0
    %2096 = vdwg.mxu0
    %2097 = vmatprep.subr.bf16.mxu0 %v1838
    %2098 = vmatpush1.bf16.msra.mxu0 %v1837
    %2099 = vmatprep.subr.bf16.mxu0 %v1841
    %2100 = vmatpush1.bf16.msra.mxu0 %v1840
    %2101 = vmatprep.subr.bf16.mxu0 %v1844
    %2102 = vmatpush1.bf16.msra.mxu0 %v1843
    %2103 = vmatprep.subr.bf16.mxu0 %v1847
    %2104 = vmatpush1.bf16.msra.mxu0 %v1846
    %2105 = vmatprep.subr.bf16.mxu0 %v1850
    %2106 = vmatpush1.bf16.msra.mxu0 %v1849
    %2107 = vmatprep.subr.bf16.mxu0 %v1853
    %2108 = vmatpush1.bf16.msra.mxu0 %v1852
    %2109 = vmatprep.subr.bf16.mxu0 %v1856
    %2110 = vmatpush1.bf16.msra.mxu0 %v1855
    %2111 = vmatprep.subr.bf16.mxu0 %v1859
    %2112 = vmatpush1.bf16.msra.mxu0 %v1858
    %2113 = vmatprep.subr.bf16.mxu0 %v1862
    %2114 = vmatpush1.bf16.msra.mxu0 %v1861
    %2115 = vmatprep.subr.bf16.mxu0 %v1865
    %2116 = vmatpush1.bf16.msra.mxu0 %v1864
    %2117 = vmatprep.subr.bf16.mxu0 %v1868
    %2118 = vmatpush1.bf16.msra.mxu0 %v1867
    %2119 = vmatprep.subr.bf16.mxu0 %v1871
    %2120 = vmatpush1.bf16.msra.mxu0 %v1870
    %2121 = vmatprep.subr.bf16.mxu0 %v1874
    %2122 = vmatpush1.bf16.msra.mxu0 %v1873
    %2123 = vmatprep.subr.bf16.mxu0 0
    %2124 = vmatpush1.bf16.msra.mxu0 0
    %2125 = vmatprep.subr.bf16.mxu0 0
    %2126 = vmatpush1.bf16.msra.mxu0 0
    %2127 = vmatprep.subr.bf16.mxu0 0
    %2128 = vmatpush1.bf16.msra.mxu0 0
    %2129 = vmatprep.mubr.bf16.mxu0 %v2013
    %2130 = vmatmul.mubr.bf16.gmra.mrb[0].mxu0 %v1274
    %v2131 = vpop.f32.mrb[0].mxu0
    %v2132 = vadd.f32 %v2091, %v2131
    %v2133 = vpop.f32.mrb[0].mxu0
    %v2134 = vadd.f32 %v2093, %v2133
    %v2135 = vpop.f32.mrb[0].mxu0
    %v2136 = vpop.f32.mrb[0].mxu0
    %2137 = vdwg.mxu0
    %2138 = vmatprep.subr.bf16.mxu0 0
    %2139 = vmatpush1.bf16.msra.mxu0 %v1743
    %2140 = vmatprep.subr.bf16.mxu0 0
    %2141 = vmatpush1.bf16.msra.mxu0 %v1746
    %2142 = vmatprep.subr.bf16.mxu0 0
    %2143 = vmatpush1.bf16.msra.mxu0 %v1749
    %2144 = vmatprep.subr.bf16.mxu0 0
    %2145 = vmatpush1.bf16.msra.mxu0 %v1752
    %2146 = vmatprep.subr.bf16.mxu0 0
    %2147 = vmatpush1.bf16.msra.mxu0 %v1755
    %2148 = vmatprep.subr.bf16.mxu0 0
    %2149 = vmatpush1.bf16.msra.mxu0 %v1758
    %2150 = vmatprep.subr.bf16.mxu0 0
    %2151 = vmatpush1.bf16.msra.mxu0 %v1761
    %2152 = vmatprep.subr.bf16.mxu0 0
    %2153 = vmatpush1.bf16.msra.mxu0 %v1764
    %2154 = vmatprep.subr.bf16.mxu0 0
    %2155 = vmatpush1.bf16.msra.mxu0 %v1767
    %2156 = vmatprep.subr.bf16.mxu0 0
    %2157 = vmatpush1.bf16.msra.mxu0 %v1770
    %2158 = vmatprep.subr.bf16.mxu0 0
    %2159 = vmatpush1.bf16.msra.mxu0 %v1773
    %2160 = vmatprep.subr.bf16.mxu0 0
    %2161 = vmatpush1.bf16.msra.mxu0 %v1776
    %2162 = vmatprep.subr.bf16.mxu0 0
    %2163 = vmatpush1.bf16.msra.mxu0 %v1779
    %2164 = vmatprep.subr.bf16.mxu0 0
    %2165 = vmatpush1.bf16.msra.mxu0 %v1782
    %2166 = vmatprep.subr.bf16.mxu0 0
    %2167 = vmatpush1.bf16.msra.mxu0 %v1785
    %2168 = vmatprep.subr.bf16.mxu0 0
    %2169 = vmatpush1.bf16.msra.mxu0 %v1788
    %2170 = vmatprep.mubr.bf16.mxu0 %v1271
    %2171 = vmatmul.mubr.bf16.gmra.mrb[0].mxu0 %v1270
    %v2172 = vpop.f32.mrb[0].mxu0
    %v2173 = vadd.f32 %v1290, %v2172
    %v2174 = vpop.f32.mrb[0].mxu0
    %v2175 = vpop.f32.mrb[0].mxu0
    %v2176 = vpop.f32.mrb[0].mxu0
    %2177 = vdwg.mxu0
    %2178 = vmatprep.subr.bf16.mxu0 0
    %2179 = vmatpush1.bf16.msra.mxu0 %v1791
    %2180 = vmatprep.subr.bf16.mxu0 0
    %2181 = vmatpush1.bf16.msra.mxu0 %v1794
    %2182 = vmatprep.subr.bf16.mxu0 0
    %2183 = vmatpush1.bf16.msra.mxu0 %v1797
    %2184 = vmatprep.subr.bf16.mxu0 0
    %2185 = vmatpush1.bf16.msra.mxu0 %v1800
    %2186 = vmatprep.subr.bf16.mxu0 0
    %2187 = vmatpush1.bf16.msra.mxu0 %v1803
    %2188 = vmatprep.subr.bf16.mxu0 0
    %2189 = vmatpush1.bf16.msra.mxu0 %v1806
    %2190 = vmatprep.subr.bf16.mxu0 0
    %2191 = vmatpush1.bf16.msra.mxu0 %v1809
    %2192 = vmatprep.subr.bf16.mxu0 0
    %2193 = vmatpush1.bf16.msra.mxu0 %v1812
    %2194 = vmatprep.subr.bf16.mxu0 0
    %2195 = vmatpush1.bf16.msra.mxu0 %v1815
    %2196 = vmatprep.subr.bf16.mxu0 0
    %2197 = vmatpush1.bf16.msra.mxu0 %v1818
    %2198 = vmatprep.subr.bf16.mxu0 0
    %2199 = vmatpush1.bf16.msra.mxu0 %v1821
    %2200 = vmatprep.subr.bf16.mxu0 0
    %2201 = vmatpush1.bf16.msra.mxu0 %v1824
    %2202 = vmatprep.subr.bf16.mxu0 0
    %2203 = vmatpush1.bf16.msra.mxu0 %v1827
    %2204 = vmatprep.subr.bf16.mxu0 0
    %2205 = vmatpush1.bf16.msra.mxu0 %v1830
    %2206 = vmatprep.subr.bf16.mxu0 0
    %2207 = vmatpush1.bf16.msra.mxu0 %v1833
    %2208 = vmatprep.subr.bf16.mxu0 0
    %2209 = vmatpush1.bf16.msra.mxu0 %v1836
    %2210 = vmatprep.mubr.bf16.mxu0 %v1273
    %2211 = vmatmul.mubr.bf16.gmra.mrb[0].mxu0 %v1272
    %v2212 = vpop.f32.mrb[0].mxu0
    %v2213 = vadd.f32 %v2173, %v2212
    %v2214 = vpop.f32.mrb[0].mxu0
    %v2215 = vpop.f32.mrb[0].mxu0
    %v2216 = vpop.f32.mrb[0].mxu0
    %2217 = vdwg.mxu0
    %2218 = vmatprep.subr.bf16.mxu0 0
    %2219 = vmatpush1.bf16.msra.mxu0 %v1839
    %2220 = vmatprep.subr.bf16.mxu0 0
    %2221 = vmatpush1.bf16.msra.mxu0 %v1842
    %2222 = vmatprep.subr.bf16.mxu0 0
    %2223 = vmatpush1.bf16.msra.mxu0 %v1845
    %2224 = vmatprep.subr.bf16.mxu0 0
    %2225 = vmatpush1.bf16.msra.mxu0 %v1848
    %2226 = vmatprep.subr.bf16.mxu0 0
    %2227 = vmatpush1.bf16.msra.mxu0 %v1851
    %2228 = vmatprep.subr.bf16.mxu0 0
    %2229 = vmatpush1.bf16.msra.mxu0 %v1854
    %2230 = vmatprep.subr.bf16.mxu0 0
    %2231 = vmatpush1.bf16.msra.mxu0 %v1857
    %2232 = vmatprep.subr.bf16.mxu0 0
    %2233 = vmatpush1.bf16.msra.mxu0 %v1860
    %2234 = vmatprep.subr.bf16.mxu0 0
    %2235 = vmatpush1.bf16.msra.mxu0 %v1863
    %2236 = vmatprep.subr.bf16.mxu0 0
    %2237 = vmatpush1.bf16.msra.mxu0 %v1866
    %2238 = vmatprep.subr.bf16.mxu0 0
    %2239 = vmatpush1.bf16.msra.mxu0 %v1869
    %2240 = vmatprep.subr.bf16.mxu0 0
    %2241 = vmatpush1.bf16.msra.mxu0 %v1872
    %2242 = vmatprep.subr.bf16.mxu0 0
    %2243 = vmatpush1.bf16.msra.mxu0 %v1875
    %2244 = vmatprep.subr.bf16.mxu0 0
    %2245 = vmatpush1.bf16.msra.mxu0 0
    %2246 = vmatprep.subr.bf16.mxu0 0
    %2247 = vmatpush1.bf16.msra.mxu0 0
    %2248 = vmatprep.subr.bf16.mxu0 0
    %2249 = vmatpush1.bf16.msra.mxu0 0
    %2250 = vmatprep.mubr.bf16.mxu0 %v2013
    %2251 = vmatmul.mubr.bf16.gmra.mrb[0].mxu0 %v1274
    %v2252 = vpop.f32.mrb[0].mxu0
    %v2253 = vadd.f32 %v2213, %v2252
    %v2254 = vpop.f32.mrb[0].mxu0
    %v2255 = vpop.f32.mrb[0].mxu0
    %v2256 = vpop.f32.mrb[0].mxu0
    %2257 = vdwg.mxu0
    %v2258 = vmax.f32 %v2132, 0.0
    %v2259 = vmax.f32 %v2134, 0.0
    %v2260 = vmax.f32 %v2253, 0.0
    %v2264 = vrot.slane %v2258, 1
    %v2265 = vrot.slane %v2259, 1
    %v2266 = vrot.slane %v2260, 1
    %2267 = vrot.lane.b32.xlu0 %v2264, 32
    %v2268 = vpop.permute.xlu0 %2267
    %2269 = vrot.lane.b32.xlu0 %v2265, 32
    %v2270 = vpop.permute.xlu0 %2269
    %2271 = vrot.lane.b32.xlu0 %v2266, 32
    %v2272 = vpop.permute.xlu0 %2271
    %v2273 = vsel %vm852, %v2268, %v2270
    %v2274 = vsel %vm852, %v2270, %v2272
    %v2278 = vrot.slane %v2258, 2
    %v2279 = vrot.slane %v2259, 2
    %v2280 = vrot.slane %v2260, 2
    %2281 = vrot.lane.b32.xlu0 %v2278, 64
    %v2282 = vpop.permute.xlu0 %2281
    %2283 = vrot.lane.b32.xlu0 %v2279, 64
    %v2284 = vpop.permute.xlu0 %2283
    %2285 = vrot.lane.b32.xlu0 %v2280, 64
    %v2286 = vpop.permute.xlu0 %2285
    %v2287 = vsel %vm409, %v2282, %v2284
    %v2288 = vsel %vm409, %v2284, %v2286
    %v2292 = vsel %vm852, %v2260, %v2268
    %v2293 = vsel %vm409, %v2274, %v2282
    %v2296 = vrot.slane %v2292, 2
    %v2297 = vrot.slane %v2273, 2
    %v2298 = vrot.slane %v2293, 2
    %v2299 = vrot.slane %v2287, 2
    %v2300 = vrot.slane %v2288, 2
    %v2308 = vsel %vm30, %v2258, %v2278
    %v2309 = vsel %vm30, %v2259, %v2279
    %v2310 = vsel %vm30, %v2292, %v2296
    %v2311 = vsel %vm30, %v2273, %v2297
    %v2312 = vsel %vm30, %v2293, %v2298
    %v2313 = vsel %vm30, %v2287, %v2299
    %v2314 = vsel %vm30, %v2288, %v2300
    %v2315 = vld [vmem:[%s1 + $0x8b8] sm:$0xf]
    %v2316 = vld [vmem:[%s1 + $0x8c4] sm:$0xf]
    %v2317 = vld [vmem:[%s1 + $0x8d0] sm:$0xf]
    %v2318 = vld [vmem:[%s1 + $0x8dc] sm:$0xf]
    %v2319 = vld [vmem:[%s1 + $0x8e8] sm:$0xf]
    %v2320 = vld [vmem:[%s1 + $0x8f4] sm:$0xf]
    %v2321 = vld [vmem:[%s1 + $0x900] sm:$0xf]
    %v2322 = vld [vmem:[%s1 + $0x90c] sm:$0xf]
    %v2323 = vld [vmem:[%s1 + $0x918] sm:$0xf]
    %v2324 = vld [vmem:[%s1 + $0x924] sm:$0xf]
    %v2325 = vld [vmem:[%s1 + $0x930] sm:$0xf]
    %v2326 = vld [vmem:[%s1 + $0x93c] sm:$0xf]
    %v2327 = vld [vmem:[%s1 + $0x948] sm:$0xf]
    %v2328 = vld [vmem:[%s1 + $0x954] sm:$0xf]
    %v2329 = vld [vmem:[%s1 + $0x960] sm:$0xf]
    %v2330 = vld [vmem:[%s1 + $0x96c] sm:$0xf]
    %v2331 = vld [vmem:[%s1 + $0x978] sm:$0xf]
    %v2332 = vld [vmem:[%s1 + $0x984] sm:$0xf]
    %v2333 = vld [vmem:[%s1 + $0x990] sm:$0xf]
    %v2334 = vld [vmem:[%s1 + $0x99c] sm:$0xf]
    %v2335 = vld [vmem:[%s1 + $0x9a8] sm:$0xf]
    %v2336 = vld [vmem:[%s1 + $0x9b4] sm:$0xf]
    %v2337 = vld [vmem:[%s1 + $0x9c0] sm:$0xf]
    %v2338 = vld [vmem:[%s1 + $0x9cc] sm:$0xf]
    %v2339 = vld [vmem:[%s1 + $0x9d8] sm:$0xf]
    %v2340 = vld [vmem:[%s1 + $0x9e4] sm:$0xf]
    %v2341 = vld [vmem:[%s1 + $0x9f0] sm:$0xf]
    %v2342 = vld [vmem:[%s1 + $0x9fc] sm:$0xf]
    %v2343 = vld [vmem:[%s1 + $0xa08] sm:$0xf]
    %v2344 = vld [vmem:[%s1 + $0xa14] sm:$0xf]
    %v2345 = vld [vmem:[%s1 + $0xa20] sm:$0xf]
    %v2346 = vld [vmem:[%s1 + $0xa2c] sm:$0xf]
    %v2347 = vld [vmem:[%s1 + $0xa38] sm:$0xf]
    %v2348 = vld [vmem:[%s1 + $0xa44] sm:$0xf]
    %v2349 = vld [vmem:[%s1 + $0xa50] sm:$0xf]
    %v2350 = vld [vmem:[%s1 + $0xa5c] sm:$0xf]
    %v2351 = vld [vmem:[%s1 + $0xa68] sm:$0xf]
    %v2352 = vld [vmem:[%s1 + $0xa74] sm:$0xf]
    %v2353 = vld [vmem:[%s1 + $0xa80] sm:$0xf]
    %v2354 = vld [vmem:[%s1 + $0xa8c] sm:$0xf]
    %v2355 = vld [vmem:[%s1 + $0xa98] sm:$0xf]
    %v2356 = vld [vmem:[%s1 + $0xaa4] sm:$0xf]
    %v2357 = vld [vmem:[%s1 + $0xab0] sm:$0xf]
    %v2358 = vld [vmem:[%s1 + $0xabc] sm:$0xf]
    %v2359 = vld [vmem:[%s1 + $0xac8] sm:$0xf]
    %v2360 = vld [vmem:[%s1 + $0xad4] sm:$0xf]
    %v2361 = vld [vmem:[%s1 + $0xae0] sm:$0xf]
    %v2362 = vld [vmem:[%s1 + $0xaec] sm:$0xf]
    %v2363 = vld [vmem:[%s1 + $0xaf8] sm:$0xf]
    %v2364 = vld [vmem:[%s1 + $0xb04] sm:$0xf]
    %v2365 = vld [vmem:[%s1 + $0xb10] sm:$0xf]
    %v2366 = vld [vmem:[%s1 + $0xb1c] sm:$0xf]
    %v2367 = vld [vmem:[%s1 + $0xb28] sm:$0xf]
    %v2368 = vld [vmem:[%s1 + $0xb34] sm:$0xf]
    %v2369 = vld [vmem:[%s1 + $0xb40] sm:$0xf]
    %v2370 = vld [vmem:[%s1 + $0xb4c] sm:$0xf]
    %v2371 = vld [vmem:[%s1 + $0xb58] sm:$0xf]
    %v2372 = vld [vmem:[%s1 + $0xb64] sm:$0xf]
    %v2373 = vld [vmem:[%s1 + $0xb70] sm:$0xf]
    %v2374 = vld [vmem:[%s1 + $0xb7c] sm:$0xf]
    %v2375 = vld [vmem:[%s1 + $0xb88] sm:$0xf]
    %v2376 = vld [vmem:[%s1 + $0xb94] sm:$0xf]
    %v2377 = vld [vmem:[%s1 + $0xba0] sm:$0xf]
    %v2378 = vld [vmem:[%s1 + $0xbac] sm:$0xf]
    %v2379 = vld [vmem:[%s1 + $0xbb8] sm:$0xf]
    %v2380 = vld [vmem:[%s1 + $0xbc4] sm:$0xf]
    %v2381 = vld [vmem:[%s1 + $0xbd0] sm:$0xf]
    %v2382 = vld [vmem:[%s1 + $0xbdc] sm:$0xf]
    %v2383 = vld [vmem:[%s1 + $0xbe8] sm:$0xf]
    %v2384 = vld [vmem:[%s1 + $0xbf4] sm:$0xf]
    %v2385 = vld [vmem:[%s1 + $0xc00] sm:$0xf]
    %v2386 = vld [vmem:[%s1 + $0xc0c] sm:$0xf]
    %v2387 = vld [vmem:[%s1 + $0xc18] sm:$0xf]
    %v2388 = vld [vmem:[%s1 + $0xc24] sm:$0xf]
    %v2389 = vld [vmem:[%s1 + $0xc30] sm:$0xf]
    %v2390 = vld [vmem:[%s1 + $0xc3c] sm:$0xf]
    %v2391 = vld [vmem:[%s1 + $0xc48] sm:$0xf]
    %v2392 = vld [vmem:[%s1 + $0xc54] sm:$0xf]
    %v2393 = vld [vmem:[%s1 + $0xc60] sm:$0xf]
    %v2394 = vld [vmem:[%s1 + $0xc6c] sm:$0xf]
    %v2395 = vld [vmem:[%s1 + $0xc78] sm:$0xf]
    %v2396 = vld [vmem:[%s1 + $0xc84] sm:$0xf]
    %v2397 = vld [vmem:[%s1 + $0xc90] sm:$0xf]
    %v2398 = vld [vmem:[%s1 + $0xc9c] sm:$0xf]
    %v2399 = vld [vmem:[%s1 + $0xca8] sm:$0xf]
    %v2400 = vld [vmem:[%s1 + $0xcb4] sm:$0xf]
    %v2401 = vld [vmem:[%s1 + $0xcc0] sm:$0xf]
    %v2402 = vld [vmem:[%s1 + $0xccc] sm:$0xf]
    %v2403 = vld [vmem:[%s1 + $0xcd8] sm:$0xf]
    %v2404 = vld [vmem:[%s1 + $0xce4] sm:$0xf]
    %v2405 = vld [vmem:[%s1 + $0xcf0] sm:$0xf]
    %v2406 = vld [vmem:[%s1 + $0xcfc] sm:$0xf]
    %v2407 = vld [vmem:[%s1 + $0xd08] sm:$0xf]
    %v2408 = vld [vmem:[%s1 + $0xd14] sm:$0xf]
    %v2409 = vld [vmem:[%s1 + $0xd20] sm:$0xf]
    %v2410 = vld [vmem:[%s1 + $0xd2c] sm:$0xf]
    %v2411 = vld [vmem:[%s1 + $0xd38] sm:$0xf]
    %v2412 = vld [vmem:[%s1 + $0xd44] sm:$0xf]
    %v2413 = vld [vmem:[%s1 + $0xd50] sm:$0xf]
    %v2414 = vld [vmem:[%s1 + $0xd5c] sm:$0xf]
    %v2415 = vld [vmem:[%s1 + $0xd68] sm:$0xf]
    %v2416 = vld [vmem:[%s1 + $0xd74] sm:$0xf]
    %v2417 = vld [vmem:[%s1 + $0xd80] sm:$0xf]
    %v2418 = vld [vmem:[%s1 + $0xd8c] sm:$0xf]
    %v2419 = vld [vmem:[%s1 + $0xd98] sm:$0xf]
    %v2420 = vld [vmem:[%s1 + $0xda4] sm:$0xf]
    %v2421 = vld [vmem:[%s1 + $0xdb0] sm:$0xf]
    %v2422 = vld [vmem:[%s1 + $0xdbc] sm:$0xf]
    %v2423 = vld [vmem:[%s1 + $0xdec] sm:$0x1]
    %v2424 = vpack.c.bf16 %v2308, %v2308
    %v2425 = vpack.c.bf16 %v2309, %v2309
    %v2426 = vpack.c.bf16 %v2310, %v2310
    %v2427 = vpack.c.bf16 %v2311, %v2311
    %v2428 = vpack.c.bf16 %v2312, %v2312
    %v2429 = vpack.c.bf16 %v2313, %v2313
    %v2430 = vpack.c.bf16 %v2314, %v2314
    %v2431 = vunpack.c.l.bf16 %v2423
    %v2432 = vlaneseq
    %v2433 = vshrl.u32 %v2432, 7
    %v2434 = vsub.s32 0, %v2433
    %v2435 = vrot.slane %v2431, %v2434
    %v2544 = vunpack.c.l.b16 %v2315
    %v2545 = vunpack.c.l.b16 %v2316
    %v2546 = vunpack.c.l.b16 %v2317
    %v2547 = vunpack.c.l.b16 %v2318
    %v2548 = vunpack.c.l.b16 %v2319
    %v2549 = vunpack.c.l.b16 %v2320
    %v2550 = vunpack.c.l.b16 %v2321
    %v2551 = vunpack.c.l.b16 %v2322
    %v2552 = vunpack.c.l.b16 %v2323
    %v2553 = vunpack.c.l.b16 %v2324
    %v2554 = vunpack.c.l.b16 %v2325
    %v2555 = vunpack.c.l.b16 %v2326
    %v2556 = vunpack.c.l.b16 %v2327
    %v2557 = vunpack.c.l.b16 %v2328
    %v2558 = vunpack.c.l.b16 %v2329
    %v2559 = vunpack.c.l.b16 %v2330
    %v2560 = vunpack.c.l.b16 %v2331
    %v2561 = vunpack.c.l.b16 %v2332
    %v2562 = vunpack.c.l.b16 %v2333
    %v2563 = vunpack.c.l.b16 %v2334
    %v2564 = vunpack.c.l.b16 %v2335
    %v2565 = vunpack.c.l.b16 %v2336
    %v2566 = vunpack.c.l.b16 %v2337
    %v2567 = vunpack.c.l.b16 %v2338
    %v2568 = vunpack.c.l.b16 %v2339
    %v2569 = vunpack.c.l.b16 %v2340
    %v2570 = vunpack.c.l.b16 %v2341
    %v2571 = vunpack.c.l.b16 %v2342
    %v2572 = vunpack.c.l.b16 %v2343
    %v2573 = vunpack.c.l.b16 %v2344
    %v2574 = vunpack.c.l.b16 %v2345
    %v2575 = vunpack.c.l.b16 %v2346
    %v2576 = vunpack.c.l.b16 %v2347
    %v2577 = vunpack.c.l.b16 %v2348
    %v2578 = vunpack.c.l.b16 %v2349
    %v2579 = vunpack.c.l.b16 %v2350
    %v2580 = vunpack.c.l.b16 %v2351
    %v2581 = vunpack.c.l.b16 %v2352
    %v2582 = vunpack.c.l.b16 %v2353
    %v2583 = vunpack.c.l.b16 %v2354
    %v2584 = vunpack.c.l.b16 %v2355
    %v2585 = vunpack.c.l.b16 %v2356
    %v2586 = vunpack.c.l.b16 %v2357
    %v2587 = vunpack.c.l.b16 %v2358
    %v2588 = vunpack.c.l.b16 %v2359
    %v2589 = vunpack.c.l.b16 %v2360
    %v2590 = vunpack.c.l.b16 %v2361
    %v2591 = vunpack.c.l.b16 %v2362
    %v2592 = vunpack.c.l.b16 %v2363
    %v2593 = vunpack.c.l.b16 %v2364
    %v2594 = vunpack.c.l.b16 %v2365
    %v2595 = vunpack.c.l.b16 %v2366
    %v2596 = vunpack.c.l.b16 %v2367
    %v2597 = vunpack.c.l.b16 %v2368
    %v2598 = vunpack.c.l.b16 %v2369
    %v2599 = vunpack.c.l.b16 %v2370
    %v2600 = vunpack.c.l.b16 %v2371
    %v2601 = vunpack.c.l.b16 %v2372
    %v2602 = vunpack.c.l.b16 %v2373
    %v2603 = vunpack.c.l.b16 %v2374
    %v2604 = vunpack.c.l.b16 %v2375
    %v2605 = vunpack.c.l.b16 %v2376
    %v2606 = vunpack.c.l.b16 %v2377
    %v2607 = vunpack.c.l.b16 %v2378
    %v2608 = vunpack.c.l.b16 %v2379
    %v2609 = vunpack.c.l.b16 %v2380
    %v2610 = vunpack.c.l.b16 %v2381
    %v2611 = vunpack.c.l.b16 %v2382
    %v2612 = vunpack.c.l.b16 %v2383
    %v2613 = vunpack.c.l.b16 %v2384
    %v2614 = vunpack.c.l.b16 %v2385
    %v2615 = vunpack.c.l.b16 %v2386
    %v2616 = vunpack.c.l.b16 %v2387
    %v2617 = vunpack.c.l.b16 %v2388
    %v2618 = vunpack.c.l.b16 %v2389
    %v2619 = vunpack.c.l.b16 %v2390
    %v2620 = vunpack.c.l.b16 %v2391
    %v2621 = vunpack.c.l.b16 %v2392
    %v2622 = vunpack.c.l.b16 %v2393
    %v2623 = vunpack.c.l.b16 %v2394
    %v2624 = vunpack.c.l.b16 %v2395
    %v2625 = vunpack.c.l.b16 %v2396
    %v2626 = vunpack.c.l.b16 %v2397
    %v2627 = vunpack.c.l.b16 %v2398
    %v2628 = vunpack.c.l.b16 %v2399
    %v2629 = vunpack.c.l.b16 %v2400
    %v2630 = vunpack.c.l.b16 %v2401
    %v2631 = vunpack.c.l.b16 %v2402
    %v2632 = vunpack.c.l.b16 %v2403
    %v2633 = vunpack.c.l.b16 %v2404
    %v2634 = vunpack.c.l.b16 %v2405
    %v2635 = vunpack.c.l.b16 %v2406
    %v2636 = vunpack.c.l.b16 %v2407
    %v2637 = vunpack.c.l.b16 %v2408
    %v2638 = vunpack.c.l.b16 %v2409
    %v2639 = vunpack.c.l.b16 %v2410
    %v2640 = vunpack.c.l.b16 %v2411
    %v2641 = vunpack.c.l.b16 %v2412
    %v2642 = vunpack.c.l.b16 %v2413
    %v2643 = vunpack.c.l.b16 %v2414
    %v2644 = vunpack.c.l.b16 %v2415
    %v2645 = vunpack.c.l.b16 %v2416
    %v2646 = vunpack.c.l.b16 %v2417
    %v2647 = vunpack.c.l.b16 %v2418
    %v2648 = vunpack.c.l.b16 %v2419
    %v2649 = vunpack.c.l.b16 %v2420
    %v2650 = vunpack.c.l.b16 %v2421
    %v2651 = vunpack.c.l.b16 %v2422
    %v2652 = vpack.c.b16 %v2545, %v2544
    %v2653 = vpack.c.b16 %v2547, %v2546
    %v2654 = vpack.c.b16 %v2549, %v2548
    %v2655 = vpack.c.b16 %v2551, %v2550
    %v2656 = vpack.c.b16 %v2553, %v2552
    %v2657 = vpack.c.b16 %v2555, %v2554
    %v2658 = vpack.c.b16 %v2557, %v2556
    %v2659 = vpack.c.b16 %v2559, %v2558
    %v2660 = vpack.c.b16 %v2561, %v2560
    %v2661 = vpack.c.b16 %v2563, %v2562
    %v2662 = vpack.c.b16 %v2565, %v2564
    %v2663 = vpack.c.b16 %v2567, %v2566
    %v2664 = vpack.c.b16 %v2569, %v2568
    %v2665 = vpack.c.b16 %v2571, %v2570
    %v2666 = vpack.c.b16 %v2573, %v2572
    %v2667 = vpack.c.b16 %v2575, %v2574
    %v2668 = vpack.c.b16 %v2577, %v2576
    %v2669 = vpack.c.b16 %v2579, %v2578
    %v2670 = vpack.c.b16 %v2581, %v2580
    %v2671 = vpack.c.b16 %v2583, %v2582
    %v2672 = vpack.c.b16 %v2585, %v2584
    %v2673 = vpack.c.b16 %v2587, %v2586
    %v2674 = vpack.c.b16 %v2589, %v2588
    %v2675 = vpack.c.b16 %v2591, %v2590
    %v2676 = vpack.c.b16 %v2593, %v2592
    %v2677 = vpack.c.b16 %v2595, %v2594
    %v2678 = vpack.c.b16 %v2597, %v2596
    %v2679 = vpack.c.b16 %v2599, %v2598
    %v2680 = vpack.c.b16 %v2601, %v2600
    %v2681 = vpack.c.b16 %v2603, %v2602
    %v2682 = vpack.c.b16 %v2605, %v2604
    %v2683 = vpack.c.b16 %v2607, %v2606
    %v2684 = vpack.c.b16 %v2609, %v2608
    %v2685 = vpack.c.b16 %v2611, %v2610
    %v2686 = vpack.c.b16 %v2613, %v2612
    %v2687 = vpack.c.b16 %v2615, %v2614
    %v2688 = vpack.c.b16 %v2617, %v2616
    %v2689 = vpack.c.b16 %v2619, %v2618
    %v2690 = vpack.c.b16 %v2621, %v2620
    %v2691 = vpack.c.b16 %v2623, %v2622
    %v2692 = vpack.c.b16 %v2625, %v2624
    %v2693 = vpack.c.b16 %v2627, %v2626
    %v2694 = vpack.c.b16 %v2629, %v2628
    %v2695 = vpack.c.b16 %v2631, %v2630
    %v2696 = vpack.c.b16 %v2633, %v2632
    %v2697 = vpack.c.b16 %v2635, %v2634
    %v2698 = vpack.c.b16 %v2637, %v2636
    %v2699 = vpack.c.b16 %v2639, %v2638
    %v2700 = vpack.c.b16 %v2641, %v2640
    %v2701 = vpack.c.b16 %v2643, %v2642
    %v2702 = vpack.c.b16 %v2645, %v2644
    %v2703 = vpack.c.b16 %v2647, %v2646
    %v2704 = vpack.c.b16 %v2649, %v2648
    %v2705 = vpack.c.b16 %v2651, %v2650
    %v2761 = vsel %vm398, %v2430, 0
    %2763 = vmatprep.subr.bf16.mxu0 0
    %2764 = vmatpush1.bf16.msra.mxu0 %v2652
    %2765 = vmatprep.subr.bf16.mxu0 0
    %2766 = vmatpush1.bf16.msra.mxu0 %v2653
    %2767 = vmatprep.subr.bf16.mxu0 0
    %2768 = vmatpush1.bf16.msra.mxu0 %v2654
    %2769 = vmatprep.subr.bf16.mxu0 0
    %2770 = vmatpush1.bf16.msra.mxu0 %v2655
    %2771 = vmatprep.subr.bf16.mxu0 0
    %2772 = vmatpush1.bf16.msra.mxu0 %v2656
    %2773 = vmatprep.subr.bf16.mxu0 0
    %2774 = vmatpush1.bf16.msra.mxu0 %v2657
    %2775 = vmatprep.subr.bf16.mxu0 0
    %2776 = vmatpush1.bf16.msra.mxu0 %v2658
    %2777 = vmatprep.subr.bf16.mxu0 0
    %2778 = vmatpush1.bf16.msra.mxu0 %v2659
    %2779 = vmatprep.subr.bf16.mxu0 0
    %2780 = vmatpush1.bf16.msra.mxu0 %v2660
    %2781 = vmatprep.subr.bf16.mxu0 0
    %2782 = vmatpush1.bf16.msra.mxu0 %v2661
    %2783 = vmatprep.subr.bf16.mxu0 0
    %2784 = vmatpush1.bf16.msra.mxu0 %v2662
    %2785 = vmatprep.subr.bf16.mxu0 0
    %2786 = vmatpush1.bf16.msra.mxu0 %v2663
    %2787 = vmatprep.subr.bf16.mxu0 0
    %2788 = vmatpush1.bf16.msra.mxu0 %v2664
    %2789 = vmatprep.subr.bf16.mxu0 0
    %2790 = vmatpush1.bf16.msra.mxu0 %v2665
    %2791 = vmatprep.subr.bf16.mxu0 0
    %2792 = vmatpush1.bf16.msra.mxu0 %v2666
    %2793 = vmatprep.subr.bf16.mxu0 0
    %2794 = vmatpush1.bf16.msra.mxu0 %v2667
    %2795 = vmatprep.mubr.bf16.mxu0 %v2425
    %2796 = vmatmul.mubr.bf16.gmra.mrb[0].mxu0 %v2424
    %v2797 = vpop.f32.mrb[0].mxu0
    %v2798 = vadd.f32 %v2435, %v2797
    %v2799 = vpop.f32.mrb[0].mxu0
    %v2800 = vpop.f32.mrb[0].mxu0
    %v2801 = vpop.f32.mrb[0].mxu0
    %2802 = vdwg.mxu0
    %2803 = vmatprep.subr.bf16.mxu0 0
    %2804 = vmatpush1.bf16.msra.mxu0 %v2668
    %2805 = vmatprep.subr.bf16.mxu0 0
    %2806 = vmatpush1.bf16.msra.mxu0 %v2669
    %2807 = vmatprep.subr.bf16.mxu0 0
    %2808 = vmatpush1.bf16.msra.mxu0 %v2670
    %2809 = vmatprep.subr.bf16.mxu0 0
    %2810 = vmatpush1.bf16.msra.mxu0 %v2671
    %2811 = vmatprep.subr.bf16.mxu0 0
    %2812 = vmatpush1.bf16.msra.mxu0 %v2672
    %2813 = vmatprep.subr.bf16.mxu0 0
    %2814 = vmatpush1.bf16.msra.mxu0 %v2673
    %2815 = vmatprep.subr.bf16.mxu0 0
    %2816 = vmatpush1.bf16.msra.mxu0 %v2674
    %2817 = vmatprep.subr.bf16.mxu0 0
    %2818 = vmatpush1.bf16.msra.mxu0 %v2675
    %2819 = vmatprep.subr.bf16.mxu0 0
    %2820 = vmatpush1.bf16.msra.mxu0 %v2676
    %2821 = vmatprep.subr.bf16.mxu0 0
    %2822 = vmatpush1.bf16.msra.mxu0 %v2677
    %2823 = vmatprep.subr.bf16.mxu0 0
    %2824 = vmatpush1.bf16.msra.mxu0 %v2678
    %2825 = vmatprep.subr.bf16.mxu0 0
    %2826 = vmatpush1.bf16.msra.mxu0 %v2679
    %2827 = vmatprep.subr.bf16.mxu0 0
    %2828 = vmatpush1.bf16.msra.mxu0 %v2680
    %2829 = vmatprep.subr.bf16.mxu0 0
    %2830 = vmatpush1.bf16.msra.mxu0 %v2681
    %2831 = vmatprep.subr.bf16.mxu0 0
    %2832 = vmatpush1.bf16.msra.mxu0 %v2682
    %2833 = vmatprep.subr.bf16.mxu0 0
    %2834 = vmatpush1.bf16.msra.mxu0 %v2683
    %2835 = vmatprep.mubr.bf16.mxu0 %v2427
    %2836 = vmatmul.mubr.bf16.gmra.mrb[0].mxu0 %v2426
    %v2837 = vpop.f32.mrb[0].mxu0
    %v2838 = vadd.f32 %v2798, %v2837
    %v2839 = vpop.f32.mrb[0].mxu0
    %v2840 = vpop.f32.mrb[0].mxu0
    %v2841 = vpop.f32.mrb[0].mxu0
    %2842 = vdwg.mxu0
    %2843 = vmatprep.subr.bf16.mxu0 0
    %2844 = vmatpush1.bf16.msra.mxu0 %v2684
    %2845 = vmatprep.subr.bf16.mxu0 0
    %2846 = vmatpush1.bf16.msra.mxu0 %v2685
    %2847 = vmatprep.subr.bf16.mxu0 0
    %2848 = vmatpush1.bf16.msra.mxu0 %v2686
    %2849 = vmatprep.subr.bf16.mxu0 0
    %2850 = vmatpush1.bf16.msra.mxu0 %v2687
    %2851 = vmatprep.subr.bf16.mxu0 0
    %2852 = vmatpush1.bf16.msra.mxu0 %v2688
    %2853 = vmatprep.subr.bf16.mxu0 0
    %2854 = vmatpush1.bf16.msra.mxu0 %v2689
    %2855 = vmatprep.subr.bf16.mxu0 0
    %2856 = vmatpush1.bf16.msra.mxu0 %v2690
    %2857 = vmatprep.subr.bf16.mxu0 0
    %2858 = vmatpush1.bf16.msra.mxu0 %v2691
    %2859 = vmatprep.subr.bf16.mxu0 0
    %2860 = vmatpush1.bf16.msra.mxu0 %v2692
    %2861 = vmatprep.subr.bf16.mxu0 0
    %2862 = vmatpush1.bf16.msra.mxu0 %v2693
    %2863 = vmatprep.subr.bf16.mxu0 0
    %2864 = vmatpush1.bf16.msra.mxu0 %v2694
    %2865 = vmatprep.subr.bf16.mxu0 0
    %2866 = vmatpush1.bf16.msra.mxu0 %v2695
    %2867 = vmatprep.subr.bf16.mxu0 0
    %2868 = vmatpush1.bf16.msra.mxu0 %v2696
    %2869 = vmatprep.subr.bf16.mxu0 0
    %2870 = vmatpush1.bf16.msra.mxu0 %v2697
    %2871 = vmatprep.subr.bf16.mxu0 0
    %2872 = vmatpush1.bf16.msra.mxu0 %v2698
    %2873 = vmatprep.subr.bf16.mxu0 0
    %2874 = vmatpush1.bf16.msra.mxu0 %v2699
    %2875 = vmatprep.mubr.bf16.mxu0 %v2429
    %2876 = vmatmul.mubr.bf16.gmra.mrb[0].mxu0 %v2428
    %v2877 = vpop.f32.mrb[0].mxu0
    %v2878 = vadd.f32 %v2838, %v2877
    %v2879 = vpop.f32.mrb[0].mxu0
    %v2880 = vpop.f32.mrb[0].mxu0
    %v2881 = vpop.f32.mrb[0].mxu0
    %2882 = vdwg.mxu0
    %2883 = vmatprep.subr.bf16.mxu0 0
    %2884 = vmatpush1.bf16.msra.mxu0 %v2700
    %2885 = vmatprep.subr.bf16.mxu0 0
    %2886 = vmatpush1.bf16.msra.mxu0 %v2701
    %2887 = vmatprep.subr.bf16.mxu0 0
    %2888 = vmatpush1.bf16.msra.mxu0 %v2702
    %2889 = vmatprep.subr.bf16.mxu0 0
    %2890 = vmatpush1.bf16.msra.mxu0 %v2703
    %2891 = vmatprep.subr.bf16.mxu0 0
    %2892 = vmatpush1.bf16.msra.mxu0 %v2704
    %2893 = vmatprep.subr.bf16.mxu0 0
    %2894 = vmatpush1.bf16.msra.mxu0 %v2705
    %2895 = vmatprep.subr.bf16.mxu0 0
    %2896 = vmatpush1.bf16.msra.mxu0 0
    %2897 = vmatprep.subr.bf16.mxu0 0
    %2898 = vmatpush1.bf16.msra.mxu0 0
    %2899 = vmatprep.subr.bf16.mxu0 0
    %2900 = vmatpush1.bf16.msra.mxu0 0
    %2901 = vmatprep.subr.bf16.mxu0 0
    %2902 = vmatpush1.bf16.msra.mxu0 0
    %2903 = vmatprep.subr.bf16.mxu0 0
    %2904 = vmatpush1.bf16.msra.mxu0 0
    %2905 = vmatprep.subr.bf16.mxu0 0
    %2906 = vmatpush1.bf16.msra.mxu0 0
    %2907 = vmatprep.subr.bf16.mxu0 0
    %2908 = vmatpush1.bf16.msra.mxu0 0
    %2909 = vmatprep.subr.bf16.mxu0 0
    %2910 = vmatpush1.bf16.msra.mxu0 0
    %2911 = vmatprep.subr.bf16.mxu0 0
    %2912 = vmatpush1.bf16.msra.mxu0 0
    %2913 = vmatprep.subr.bf16.mxu0 0
    %2914 = vmatpush1.bf16.msra.mxu0 0
    %2915 = vmatprep.mubr.bf16.mxu0 0
    %2916 = vmatmul.mubr.bf16.gmra.mrb[0].mxu0 %v2761
    %v2917 = vpop.f32.mrb[0].mxu0
    %v2918 = vadd.f32 %v2878, %v2917
    %v2919 = vpop.f32.mrb[0].mxu0
    %v2920 = vpop.f32.mrb[0].mxu0
    %v2921 = vpop.f32.mrb[0].mxu0
    %2922 = vdwg.mxu0
    %2923 = vst [vmem:[#allocation2] sm:$0x3] %v2918
    // Predicated region
    $region10: #{convnet2d_forward.1} parent=1 // pred_check
      _
    $region11: #{convnet2d_forward.1} parent=1 // pred_check_branch
      %2925 = sbr.rel (0) target = $region13
    $region12: #{convnet2d_forward.1} parent=1 // pred_region
      %s2927 = ssub.s32 32, 32
      %2928 = vsyncadd [#allocation3], %s2927
      %s2930 = sshll.u32 [#allocation2], 4
      %s2931 = int_to_ptr.vmem [resolvable:$true] %s2930
      %2933 = dma.vmem_to_hbm [thread:$0]  %s2931, 32, %s2, [#allocation3]
    $region13: #{convnet2d_forward.1} parent=1 // pred_fallthru
      _
    // Predicated region
    $region14: #{convnet2d_forward.1} parent=1 // pred_check
      _
    $region15: #{convnet2d_forward.1} parent=1 // pred_check_branch
      %2935 = sbr.rel (0) target = $region17
    $region16: #{convnet2d_forward.1} parent=1 // pred_region
      %2936 = dma.done [#allocation3], 32
    $region17: #{convnet2d_forward.1} parent=1 // pred_fallthru
      _
    %2937 = vsyncpa [#allocation3], 1

</llo_original>
